<compile_context>
chip_gen: v5e
topology: v5e:2x2
jax: 0.10.0
libtpu: 0.0.40
codegen_flags: <defaults>
</compile_context>

<pallas_src>
import jax
import jax.numpy as jnp
from jax.experimental import pallas as pl
from jax.experimental.pallas import tpu as pltpu


# ----------------------------------------------------------------------------
# Kernel
# ----------------------------------------------------------------------------
def text_sa_kernel(local_ref, gw_ref, wl_ref, bl_ref, bc_ref, out_ref):
    bb, L, D = local_ref.shape
    x = local_ref[...]                                 # (BB, L, D), f32 or bf16
    x_f32 = x.astype(jnp.float32)                      # VPU/EUP math in f32

    # embedding_local: Linear -> Tanh (Dropout = identity at eval).
    # Batch folded into the MXU M dimension: ONE (BB*L, D) @ (D, D) matmul,
    # bf16 inputs by default, f32 accumulation.
    x2 = x.reshape(bb * L, D).astype(wl_ref.dtype)
    l_emb = jnp.tanh(
        jnp.dot(x2, wl_ref[...], preferred_element_type=jnp.float32)
        + bl_ref[...]
    ).reshape(bb, L, D)                                # (BB, L, D), f32

    # embedding_common fused with the precomputed global branch:
    #   gw = tanh(raw_global @ Wg + bg) * w_common        (wrapper)
    #   logits[b, l] = sum_d l_emb[b, l, d] * gw[b, d] + b_common
    logits = jnp.sum(l_emb * gw_ref[...][:, None, :], axis=-1) + bc_ref[0, 0]

    # softmax over the word axis L (lane reductions over all BB rows at once)
    m = jnp.max(logits, axis=-1, keepdims=True)
    p = jnp.exp(logits - m)
    w = p / jnp.sum(p, axis=-1, keepdims=True)         # (BB, L)

    # attention-weighted sum of the ORIGINAL word embeddings
    out_ref[...] = jnp.sum(w[:, :, None] * x_f32, axis=1).astype(out_ref.dtype)


# ----------------------------------------------------------------------------
# VMEM sizing helpers (padded tile shapes)
# ----------------------------------------------------------------------------
def _round_up(x, m):
    return (x + m - 1) // m * m


def _padded_bytes(shape, dtype):
    """(8,128)-tile-padded VMEM footprint of one buffer of `shape`/`dtype`."""
    itemsize = jnp.dtype(dtype).itemsize
    if len(shape) == 0:
        return max(itemsize, 4)
    if len(shape) == 1:
        return _round_up(shape[0], 128) * itemsize
    sublane = 8 * max(1, 4 // itemsize)                # 8 for f32, 16 for bf16
    lead = 1
    for d in shape[:-2]:
        lead *= d
    return lead * _round_up(shape[-2], sublane) * _round_up(shape[-1], 128) * itemsize


def _vmem_capacity_bytes():
    try:
        return int(pltpu.get_tpu_info().vmem_capacity_bytes)
    except Exception:
        return 64 << 20                                # conservative (v7x per-TC)


def _step_vmem_bytes(bb, L, D, local_dtype, compute_dtype, single_buffer_weights=True):
    wbuf = 1 if single_buffer_weights else 2
    return (2 * _padded_bytes((bb, L, D), local_dtype)       # local (double-buffered)
            + 2 * _padded_bytes((bb, D), jnp.float32)        # gw blocks
            + 2 * _padded_bytes((bb, D), jnp.float32)        # out blocks
            + wbuf * _padded_bytes((D, D), compute_dtype)    # W_local
            + wbuf * _padded_bytes((1, D), jnp.float32))     # b_local


def _choose_block_batch(B, L, D, local_dtype, compute_dtype, vmem_budget, min_steps=4):
    """Largest batch block BB (divisor of B, multiple of 8 or == B) whose padded
    VMEM footprint fits the budget; prefers >= min_steps grid steps (megacore
    pipelining on v7x), then >=2, then 1 for small batches."""
    divisors = [d for d in range(1, B + 1) if B % d == 0]
    valid = [d for d in divisors if d % 8 == 0 or d == B]
    fitting = [d for d in valid
               if _step_vmem_bytes(d, L, D, local_dtype, compute_dtype) <= vmem_budget]
    if not fitting:
        fitting = [min(valid)]
    for steps in (min_steps, 2, 1):
        cands = [d for d in fitting if B // d >= steps]
        if cands:
            return max(cands)
    return max(fitting)


# ----------------------------------------------------------------------------
# Forward wrapper
# ----------------------------------------------------------------------------
def text_sa_forward(local, raw_global, params, *, block_batch=None,
                    use_bf16_matmul=True, stream_local_bf16=False,
                    force_pallas=False, interpret=False):
    """TextSA forward (eval mode). local: (B, L, D), raw_global: (B, D)."""
    B, L, D = local.shape
    wl, bl, wg, bg, wc, bc = params
    hp = jax.lax.Precision.HIGHEST

    # Hoisted global branch (rank-1 per batch element): one dense XLA matmul,
    # with w_common folded in so the kernel never touches Wg / bg / wc.
    g_emb = jnp.tanh(jnp.dot(raw_global, wg, precision=hp) + bg)   # (B, D)
    gw = (g_emb * wc.reshape(1, D)).astype(jnp.float32)            # (B, D)

    # Lane-padding + MXU under-utilization make the kernel a net loss for
    # D < 128: use plain XLA there unless explicitly forced.
    if D < 128 and not force_pallas:
        l_emb = jnp.tanh(jnp.dot(local, wl, precision=hp) + bl)
        logits = jnp.sum(l_emb * gw[:, None, :], axis=-1) + bc[0, 0]
        w = jax.nn.softmax(logits, axis=1)
        return jnp.sum(w[:, :, None] * local, axis=1)

    compute_dtype = jnp.bfloat16 if use_bf16_matmul else jnp.float32
    wl_c = wl.astype(compute_dtype)
    local_in = local.astype(jnp.bfloat16) if stream_local_bf16 else local

    vmem_budget = int(0.8 * _vmem_capacity_bytes())
    bb = (block_batch if block_batch is not None
          else _choose_block_batch(B, L, D, local_in.dtype, compute_dtype, vmem_budget))
    assert B % bb == 0, "block_batch must divide the batch size"

    step_bytes = _step_vmem_bytes(bb, L, D, local_in.dtype, compute_dtype)
    vmem_limit = int(min(max(int(1.5 * step_bytes) + (4 << 20), 16 << 20), vmem_budget))

    cost = pl.CostEstimate(
        flops=int(2 * B * L * D * D + 4 * B * L * D),
        transcendentals=int(B * L * (D + 1)),
        bytes_accessed=int(B * L * D * jnp.dtype(local_in.dtype).itemsize
                           + 2 * B * D * 4
                           + D * D * jnp.dtype(compute_dtype).itemsize + D * 4),
    )

    def build_call(weight_pipeline_mode):
        def wspec(shape, index_map):
            if weight_pipeline_mode is None:
                return pl.BlockSpec(shape, index_map)
            return pl.BlockSpec(shape, index_map, pipeline_mode=weight_pipeline_mode)

        in_specs = [
            pl.BlockSpec((bb, L, D), lambda b: (b, 0, 0)),        # local words
            pl.BlockSpec((bb, D), lambda b: (b, 0)),              # gw = g_emb * w_common
            wspec((D, D), lambda b: (0, 0)),                      # W_local (in, out)
            wspec((1, D), lambda b: (0, 0)),                      # b_local
            pl.BlockSpec(memory_space=pltpu.MemorySpace.SMEM),    # b_common scalar
        ]
        return pl.pallas_call(
            text_sa_kernel,
            out_shape=jax.ShapeDtypeStruct((B, D), jnp.float32),
            grid=(B // bb,),
            in_specs=in_specs,
            out_specs=pl.BlockSpec((bb, D), lambda b: (b, 0)),
            compiler_params=pltpu.CompilerParams(
                dimension_semantics=("parallel",),
                vmem_limit_bytes=vmem_limit),
            cost_estimate=cost,
            interpret=interpret,
        )

    args = (local_in, gw, wl_c, bl, bc)
    try:
        # Constant-index weight blocks are fetched once; a single VMEM buffer
        # suffices and the saved space goes into a larger batch block.
        return build_call(pl.Buffered(1))(*args)
    except Exception:
        # Fallback if this JAX/Mosaic build rejects pipeline_mode here.
        return build_call(None)(*args)


# ----------------------------------------------------------------------------
# Params / reference
# ----------------------------------------------------------------------------
def init_params(key, embed_dim):
    """Matches TextSA.init_weights: uniform(-r, r) weights, zero biases.
    Linear weights stored pre-transposed as (in_features, out_features)."""
    k1, k2, k3 = jax.random.split(key, 3)
    r = float(jnp.sqrt(6.0) / jnp.sqrt(embed_dim + embed_dim))
    rc = float(jnp.sqrt(6.0) / jnp.sqrt(embed_dim + 1))
    wl = jax.random.uniform(k1, (embed_dim, embed_dim), jnp.float32, -r, r)
    bl = jnp.zeros((1, embed_dim), jnp.float32)
    wg = jax.random.uniform(k2, (embed_dim, embed_dim), jnp.float32, -r, r)
    bg = jnp.zeros((1, embed_dim), jnp.float32)
    wc = jax.random.uniform(k3, (1, embed_dim), jnp.float32, -rc, rc)  # Linear(D, 1)
    bc = jnp.zeros((1, 1), jnp.float32)
    return wl, bl, wg, bg, wc, bc


def text_sa_reference(local, raw_global, params):
    """Pure-JAX reference mirroring the PyTorch forward (eval mode)."""
    wl, bl, wg, bg, wc, bc = params
    hp = jax.lax.Precision.HIGHEST
    l_emb = jnp.tanh(jnp.dot(local, wl, precision=hp) + bl)          # (B, L, D)
    g_emb = jnp.tanh(jnp.dot(raw_global, wg, precision=hp) + bg)     # (B, D)
    common = l_emb * g_emb[:, None, :]
    logits = jnp.sum(common * wc[None, :, :], axis=-1) + bc[0, 0]    # (B, L)
    w = jax.nn.softmax(logits, axis=1)
    return jnp.sum(w[:, :, None] * local, axis=1)                    # (B, D)


# ----------------------------------------------------------------------------
# Demo / smoke test
# ----------------------------------------------------------------------------
if __name__ == "__main__":
    B, L, D = 16, 8, 128          # small shapes; D lane-dense so the Pallas path runs
    key = jax.random.PRNGKey(0)
    k_local, k_params = jax.random.split(key)

    local = jax.random.normal(k_local, (B, L, D), jnp.float32)
    raw_global = jnp.mean(local, axis=1)                             # averaged words
    params = init_params(k_params, D)

    ref = jax.block_until_ready(text_sa_reference(local, raw_global, params))

    # f32 MXU path: tight agreement with the reference.
    out_f32 = jax.block_until_ready(
        text_sa_forward(local, raw_global, params,
                        use_bf16_matmul=False, stream_local_bf16=False))
    assert out_f32.shape == (B, D)
    assert jnp.allclose(out_f32, ref, atol=2e-3, rtol=2e-3), "f32 path mismatch"

    # Default fast path: bf16 MXU matmul with f32 accumulation.
    out = jax.block_until_ready(text_sa_forward(local, raw_global, params))
    assert out.shape == (B, D)
    assert float(jnp.max(jnp.abs(out - ref))) < 5e-2, "bf16-matmul path mismatch"

    # bf16-streamed `local` (halves HBM read traffic; slightly looser numerics).
    out_stream = jax.block_until_ready(
        text_sa_forward(local, raw_global, params, stream_local_bf16=True))
    assert float(jnp.max(jnp.abs(out_stream - ref))) < 5e-2, "bf16-stream path mismatch"

    print("KERNEL_OK")
</pallas_src>

<mosaic_0001>
module attributes {stable_mosaic.version = 11 : i64} {
  func.func @text_sa_kernel(%arg0: i32, %arg1: memref<8x8x128xf32, #tpu.memory_space<vmem>>, %arg2: memref<8x128xf32, #tpu.memory_space<vmem>>, %arg3: memref<128x128xf32, #tpu.memory_space<vmem>>, %arg4: memref<1x128xf32, #tpu.memory_space<vmem>>, %arg5: memref<1x1xf32, #tpu.memory_space<smem>>, %arg6: memref<8x128xf32, #tpu.memory_space<vmem>>) attributes {dimension_semantics = [#tpu.dimension_semantics<parallel>], iteration_bounds = array<i64: 2>, scalar_prefetch = 0 : i64, scratch_operands = 0 : i64, tpu.core_type = #tpu.core_type<tc>, window_params = [{transform_indices = @transform_0, window_bounds = array<i64: 8, 8, 128>}, {transform_indices = @transform_1, window_bounds = array<i64: 8, 128>}, {pipeline_mode = #tpu.pipeline_mode<synchronous>, transform_indices = @transform_2, window_bounds = array<i64: 128, 128>}, {pipeline_mode = #tpu.pipeline_mode<synchronous>, transform_indices = @transform_3, window_bounds = array<i64: 1, 128>}, {transform_indices = @transform_4, window_bounds = array<i64: 1, 1>}, {transform_indices = @transform_5, window_bounds = array<i64: 8, 128>}]} {
    %c0 = arith.constant 0 : index
    %c0_0 = arith.constant 0 : index
    %c0_1 = arith.constant 0 : index
    %0 = vector.load %arg1[%c0, %c0_0, %c0_1] : memref<8x8x128xf32, #tpu.memory_space<vmem>>, vector<8x8x128xf32>
    %1 = vector.shape_cast %0 : vector<8x8x128xf32> to vector<64x128xf32>
    %c0_2 = arith.constant 0 : index
    %c0_3 = arith.constant 0 : index
    %2 = vector.load %arg3[%c0_2, %c0_3] : memref<128x128xf32, #tpu.memory_space<vmem>>, vector<128x128xf32>
    %cst = arith.constant dense<0.000000e+00> : vector<64x128xf32>
    %3 = tpu.matmul %1, %2, %cst {dimension_numbers = #tpu.dot_dimension_numbers<[1], [0], [0], [1], [0, 0, 1, 1], [], []>} : vector<64x128xf32>, vector<128x128xf32>, vector<64x128xf32> -> vector<64x128xf32>
    %c0_4 = arith.constant 0 : index
    %c0_5 = arith.constant 0 : index
    %4 = vector.load %arg4[%c0_4, %c0_5] : memref<1x128xf32, #tpu.memory_space<vmem>>, vector<1x128xf32>
    %5 = vector.broadcast %4 : vector<1x128xf32> to vector<64x128xf32>
    %6 = arith.addf %3, %5 : vector<64x128xf32>
    %7 = math.tanh %6 : vector<64x128xf32>
    %8 = vector.shape_cast %7 : vector<64x128xf32> to vector<8x8x128xf32>
    %c0_6 = arith.constant 0 : index
    %c0_7 = arith.constant 0 : index
    %9 = vector.load %arg2[%c0_6, %c0_7] : memref<8x128xf32, #tpu.memory_space<vmem>>, vector<8x128xf32>
    %10 = vector.shape_cast %9 : vector<8x128xf32> to vector<8x1x128xf32>
    %11 = vector.broadcast %10 : vector<8x1x128xf32> to vector<8x8x128xf32>
    %12 = arith.mulf %8, %11 : vector<8x8x128xf32>
    %cst_8 = arith.constant dense<0.000000e+00> : vector<8x8xf32>
    %13 = vector.multi_reduction <add>, %12, %cst_8 [2] : vector<8x8x128xf32> to vector<8x8xf32>
    %c0_9 = arith.constant 0 : index
    %c0_10 = arith.constant 0 : index
    %14 = memref.load %arg5[%c0_9, %c0_10] : memref<1x1xf32, #tpu.memory_space<smem>>
    %15 = vector.broadcast %14 : f32 to vector<8x8xf32>
    %16 = arith.addf %13, %15 : vector<8x8xf32>
    %cst_11 = arith.constant dense<0xFF800000> : vector<8xf32>
    %17 = vector.multi_reduction <maximumf>, %16, %cst_11 [1] : vector<8x8xf32> to vector<8xf32>
    %18 = vector.shape_cast %17 : vector<8xf32> to vector<8x1xf32>
    %19 = vector.broadcast %18 : vector<8x1xf32> to vector<8x8xf32>
    %20 = arith.subf %16, %19 : vector<8x8xf32>
    %21 = math.exp %20 : vector<8x8xf32>
    %cst_12 = arith.constant dense<0.000000e+00> : vector<8xf32>
    %22 = vector.multi_reduction <add>, %21, %cst_12 [1] : vector<8x8xf32> to vector<8xf32>
    %23 = vector.shape_cast %22 : vector<8xf32> to vector<8x1xf32>
    %24 = vector.broadcast %23 : vector<8x1xf32> to vector<8x8xf32>
    %25 = arith.divf %21, %24 : vector<8x8xf32>
    %26 = vector.shape_cast %25 : vector<8x8xf32> to vector<8x8x1xf32>
    %27 = vector.broadcast %26 : vector<8x8x1xf32> to vector<8x8x128xf32>
    %28 = arith.mulf %27, %0 : vector<8x8x128xf32>
    %cst_13 = arith.constant dense<0.000000e+00> : vector<8x128xf32>
    %29 = vector.multi_reduction <add>, %28, %cst_13 [1] : vector<8x8x128xf32> to vector<8x128xf32>
    %c0_14 = arith.constant 0 : index
    %c0_15 = arith.constant 0 : index
    %30 = vector.load %arg6[%c0_14, %c0_15] : memref<8x128xf32, #tpu.memory_space<vmem>>, vector<8x128xf32>
    tpu.vector_store %arg6[%c0_14, %c0_15], %29 {strides = array<i32>} : memref<8x128xf32, #tpu.memory_space<vmem>>, vector<8x128xf32>,
    return
  }
  func.func @transform_0(%arg0: i32) -> (i32, i32, i32) {
    %c0_i32 = arith.constant 0 : i32
    %c0_i32_0 = arith.constant 0 : i32
    %c0_i32_1 = arith.constant 0 : i32
    return %arg0, %c0_i32, %c0_i32_0 : i32, i32, i32
  }
  func.func @transform_1(%arg0: i32) -> (i32, i32) {
    %c0_i32 = arith.constant 0 : i32
    %c0_i32_0 = arith.constant 0 : i32
    return %arg0, %c0_i32 : i32, i32
  }
  func.func @transform_2(%arg0: i32) -> (i32, i32) {
    %c0_i32 = arith.constant 0 : i32
    %c0_i32_0 = arith.constant 0 : i32
    %c0_i32_1 = arith.constant 0 : i32
    return %c0_i32, %c0_i32_0 : i32, i32
  }
  func.func @transform_3(%arg0: i32) -> (i32, i32) {
    %c0_i32 = arith.constant 0 : i32
    %c0_i32_0 = arith.constant 0 : i32
    %c0_i32_1 = arith.constant 0 : i32
    return %c0_i32, %c0_i32_0 : i32, i32
  }
  func.func @transform_4(%arg0: i32) -> (i32, i32) {
    %c0_i32 = arith.constant 0 : i32
    %c0_i32_0 = arith.constant 0 : i32
    %c0_i32_1 = arith.constant 0 : i32
    return %c0_i32, %c0_i32_0 : i32, i32
  }
  func.func @transform_5(%arg0: i32) -> (i32, i32) {
    %c0_i32 = arith.constant 0 : i32
    %c0_i32_0 = arith.constant 0 : i32
    return %arg0, %c0_i32 : i32, i32
  }
}

module attributes {stable_mosaic.version = 11 : i64} {
  func.func @text_sa_kernel(%arg0: i32, %arg1: memref<8x8x128xf32, #tpu.memory_space<vmem>>, %arg2: memref<8x128xf32, #tpu.memory_space<vmem>>, %arg3: memref<128x128xf32, #tpu.memory_space<vmem>>, %arg4: memref<1x128xf32, #tpu.memory_space<vmem>>, %arg5: memref<1x1xf32, #tpu.memory_space<smem>>, %arg6: memref<8x128xf32, #tpu.memory_space<vmem>>) attributes {dimension_semantics = [#tpu.dimension_semantics<parallel>], iteration_bounds = array<i64: 2>, scalar_prefetch = 0 : i64, scratch_operands = 0 : i64, tpu.core_type = #tpu.core_type<tc>, window_params = [{transform_indices = @transform_0, window_bounds = array<i64: 8, 8, 128>}, {transform_indices = @transform_1, window_bounds = array<i64: 8, 128>}, {pipeline_mode = #tpu.pipeline_mode<synchronous>, transform_indices = @transform_2, window_bounds = array<i64: 128, 128>}, {pipeline_mode = #tpu.pipeline_mode<synchronous>, transform_indices = @transform_3, window_bounds = array<i64: 1, 128>}, {transform_indices = @transform_4, window_bounds = array<i64: 1, 1>}, {transform_indices = @transform_5, window_bounds = array<i64: 8, 128>}]} {
    %c0 = arith.constant 0 : index
    %c0_0 = arith.constant 0 : index
    %c0_1 = arith.constant 0 : index
    %0 = vector.load %arg1[%c0, %c0_0, %c0_1] : memref<8x8x128xf32, #tpu.memory_space<vmem>>, vector<8x8x128xf32>
    %1 = vector.shape_cast %0 : vector<8x8x128xf32> to vector<64x128xf32>
    %c0_2 = arith.constant 0 : index
    %c0_3 = arith.constant 0 : index
    %2 = vector.load %arg3[%c0_2, %c0_3] : memref<128x128xf32, #tpu.memory_space<vmem>>, vector<128x128xf32>
    %cst = arith.constant dense<0.000000e+00> : vector<64x128xf32>
    %3 = tpu.matmul %1, %2, %cst {dimension_numbers = #tpu.dot_dimension_numbers<[1], [0], [0], [1], [0, 0, 1, 1], [], []>} : vector<64x128xf32>, vector<128x128xf32>, vector<64x128xf32> -> vector<64x128xf32>
    %c0_4 = arith.constant 0 : index
    %c0_5 = arith.constant 0 : index
    %4 = vector.load %arg4[%c0_4, %c0_5] : memref<1x128xf32, #tpu.memory_space<vmem>>, vector<1x128xf32>
    %5 = vector.broadcast %4 : vector<1x128xf32> to vector<64x128xf32>
    %6 = arith.addf %3, %5 : vector<64x128xf32>
    %7 = math.tanh %6 : vector<64x128xf32>
    %8 = vector.shape_cast %7 : vector<64x128xf32> to vector<8x8x128xf32>
    %c0_6 = arith.constant 0 : index
    %c0_7 = arith.constant 0 : index
    %9 = vector.load %arg2[%c0_6, %c0_7] : memref<8x128xf32, #tpu.memory_space<vmem>>, vector<8x128xf32>
    %10 = vector.shape_cast %9 : vector<8x128xf32> to vector<8x1x128xf32>
    %11 = vector.broadcast %10 : vector<8x1x128xf32> to vector<8x8x128xf32>
    %12 = arith.mulf %8, %11 : vector<8x8x128xf32>
    %cst_8 = arith.constant dense<0.000000e+00> : vector<8x8xf32>
    %13 = vector.multi_reduction <add>, %12, %cst_8 [2] : vector<8x8x128xf32> to vector<8x8xf32>
    %c0_9 = arith.constant 0 : index
    %c0_10 = arith.constant 0 : index
    %14 = memref.load %arg5[%c0_9, %c0_10] : memref<1x1xf32, #tpu.memory_space<smem>>
    %15 = vector.broadcast %14 : f32 to vector<8x8xf32>
    %16 = arith.addf %13, %15 : vector<8x8xf32>
    %cst_11 = arith.constant dense<0xFF800000> : vector<8xf32>
    %17 = vector.multi_reduction <maximumf>, %16, %cst_11 [1] : vector<8x8xf32> to vector<8xf32>
    %18 = vector.shape_cast %17 : vector<8xf32> to vector<8x1xf32>
    %19 = vector.broadcast %18 : vector<8x1xf32> to vector<8x8xf32>
    %20 = arith.subf %16, %19 : vector<8x8xf32>
    %21 = math.exp %20 : vector<8x8xf32>
    %cst_12 = arith.constant dense<0.000000e+00> : vector<8xf32>
    %22 = vector.multi_reduction <add>, %21, %cst_12 [1] : vector<8x8xf32> to vector<8xf32>
    %23 = vector.shape_cast %22 : vector<8xf32> to vector<8x1xf32>
    %24 = vector.broadcast %23 : vector<8x1xf32> to vector<8x8xf32>
    %25 = arith.divf %21, %24 : vector<8x8xf32>
    %26 = vector.shape_cast %25 : vector<8x8xf32> to vector<8x8x1xf32>
    %27 = vector.broadcast %26 : vector<8x8x1xf32> to vector<8x8x128xf32>
    %28 = arith.mulf %27, %0 : vector<8x8x128xf32>
    %cst_13 = arith.constant dense<0.000000e+00> : vector<8x128xf32>
    %29 = vector.multi_reduction <add>, %28, %cst_13 [1] : vector<8x8x128xf32> to vector<8x128xf32>
    %c0_14 = arith.constant 0 : index
    %c0_15 = arith.constant 0 : index
    %30 = vector.load %arg6[%c0_14, %c0_15] : memref<8x128xf32, #tpu.memory_space<vmem>>, vector<8x128xf32>
    tpu.vector_store %arg6[%c0_14, %c0_15], %29 {strides = array<i32>} : memref<8x128xf32, #tpu.memory_space<vmem>>, vector<8x128xf32>,
    return
  }
  func.func @transform_0(%arg0: i32) -> (i32, i32, i32) {
    %c0_i32 = arith.constant 0 : i32
    %c0_i32_0 = arith.constant 0 : i32
    %c0_i32_1 = arith.constant 0 : i32
    return %arg0, %c0_i32, %c0_i32_0 : i32, i32, i32
  }
  func.func @transform_1(%arg0: i32) -> (i32, i32) {
    %c0_i32 = arith.constant 0 : i32
    %c0_i32_0 = arith.constant 0 : i32
    return %arg0, %c0_i32 : i32, i32
  }
  func.func @transform_2(%arg0: i32) -> (i32, i32) {
    %c0_i32 = arith.constant 0 : i32
    %c0_i32_0 = arith.constant 0 : i32
    %c0_i32_1 = arith.constant 0 : i32
    return %c0_i32, %c0_i32_0 : i32, i32
  }
  func.func @transform_3(%arg0: i32) -> (i32, i32) {
    %c0_i32 = arith.constant 0 : i32
    %c0_i32_0 = arith.constant 0 : i32
    %c0_i32_1 = arith.constant 0 : i32
    return %c0_i32, %c0_i32_0 : i32, i32
  }
  func.func @transform_4(%arg0: i32) -> (i32, i32) {
    %c0_i32 = arith.constant 0 : i32
    %c0_i32_0 = arith.constant 0 : i32
    %c0_i32_1 = arith.constant 0 : i32
    return %c0_i32, %c0_i32_0 : i32, i32
  }
  func.func @transform_5(%arg0: i32) -> (i32, i32) {
    %c0_i32 = arith.constant 0 : i32
    %c0_i32_0 = arith.constant 0 : i32
    return %arg0, %c0_i32 : i32, i32
  }
}

</mosaic_0001>

<llo_original>
// kernel: tpu_custom_call.1
$region0: #{tpu_custom_call.1}
  #allocation0 [shape = 'u32[]', space=smem, size = 0x4, offset = 0x4, fixed_abs, tag = 'smem constant byte address 0x4 - core index']
  #allocation1 [shape = 'u32[72,128]{1,0:T(1,128)}', space=vmem, size = 0x9000, scoped, tag = 'internal scratch']
  #allocation2 [shape = 'f32[1,1]{1,0:T(1,128)S(6)}', space=smem, size = 0x200, scoped, tag = 'scoped memory for tpu_custom_call.1']
  %s0 = inlined_call_operand.hbm [shape: f32[16,8,128], index: 0, kind: input, shape index: {}]
  %s1 = inlined_call_operand.hbm [shape: f32[16,128], index: 1, kind: input, shape index: {}]
  %s2 = inlined_call_operand.hbm [shape: f32[128,128], index: 2, kind: input, shape index: {}]
  %s3 = inlined_call_operand.vmem [shape: f32[1,128], index: 3, kind: input, shape index: {}]
  %s4 = inlined_call_operand.<no memory space> [shape: f32[1,1], index: 4, kind: input, shape index: {}]
  %s5 = inlined_call_operand.hbm [shape: f32[16,128], index: 5, kind: output, shape index: {}]
  %s6 = sld [smem:[#allocation0]]
  $region65: #{tpu_custom_call.1} parent=0
    _
  %s8 = ssub.s32 1, %s6
  %s9 = scalar_select 0, %s8, %s6
  %10 = sst [smem:[#allocation2]] %s4
  $region1: #{tpu_custom_call.1} parent=0
    #allocation3 [shape = 'u8[65536]{0}', space=vmem, size = 0x10000, scoped, tag = 'input window, operand 0']
    #allocation4 [shape = 's32[2]{0}', space=sflag, size = 0x8, scoped, tag = 'scoped memory for tpu_custom_call.1']
    #allocation5 [shape = 's32[2]{0}', space=sflag, size = 0x8, scoped, tag = 'scoped memory for tpu_custom_call.1']
    #allocation6 [shape = 'u8[8192]{0}', space=vmem, size = 0x2000, scoped, tag = 'input window, operand 1']
    #allocation7 [shape = 's32[2]{0}', space=sflag, size = 0x8, scoped, tag = 'scoped memory for tpu_custom_call.1']
    #allocation8 [shape = 'u8[65536]{0}', space=vmem, size = 0x10000, scoped, tag = 'input window, operand 2, single buffered']
    #allocation9 [shape = 'u8[8192]{0}', space=vmem, size = 0x2000, scoped, tag = 'output window, operand 0']
    %11 = vsyncpa [#allocation4], 0
    %s12 = scalar_lea.sflag [#allocation4], 1
    %13 = vsyncpa %s12, 0
    %14 = vsyncpa [#allocation7], 0
    %s15 = scalar_lea.sflag [#allocation7], 1
    %16 = vsyncpa %s15, 0
    %17 = vsyncpa [#allocation5], 0
    %s18 = scalar_lea.sflag [#allocation5], 1
    %19 = vsyncpa %s18, 0
    loop: start=0, step=1, limit=4
    $region2: #{tpu_custom_call.1} parent=1 // loop_pre_header
      _
    $region3: #{tpu_custom_call.1} parent=1 // loop_header
      %s21 = sphi 0, %s25
      %p22 = scmp.ge.s32.totalorder %s21, 4
      %s31 = sphi 0, %s33
      %s34 = sphi 0, %s31
      %s35 = sphi 0, %s34
      %s51 = sphi 0, %s35
      %s57 = sphi 0, %s59
      %s60 = sphi 0, %s57
      %s61 = sphi 0, %s60
      %s77 = sphi 0, %s61
      %s81 = sphi 0, %s81
      %s83 = sphi 0, %s81
      %s84 = sphi 0, %s83
      %s98 = sphi 0, %s84
      %s102 = sphi 0, %s102
      %s104 = sphi 0, %s102
      %s105 = sphi 0, %s104
      %s119 = sphi 0, %s105
      %s123 = sphi 0, %s123
      %s125 = sphi 0, %s123
      %s126 = sphi 0, %s125
      %s140 = sphi 0, %s126
      %s146 = sphi 0, %s148
      %s149 = sphi 0, %s146
      %s150 = sphi 0, %s149
      %s166 = sphi 0, %s150
    $region4: #{tpu_custom_call.1} parent=1 // loop_header_branch
      %24 = sbr.rel (%p22) target = $region8
    $region5: #{tpu_custom_call.1} parent=1 // loop_body
      %s26 = ssub.s32 %s21, 1
      %s27 = ssub.s32 %s21, 2
      %s28 = sadd.s32 %s21, 1
      %s29 = ssub.s32 %s21, %s28
      %p30 = scmp.eq.s32.totalorder %s29, 0
      %s32 = sadd.s32 %s31, 1
      %s33 = scalar_select %p30, %s31, %s32
      %p36 = pneg %p30
      %p37 = scmp.eq.s32.totalorder %s21, 1
      %p38 = por %p36, %p37
      %p39 = scmp.ne.s32.totalorder %s31, %s34
      %p40 = scmp.eq.s32.totalorder %s21, 0
      %p41 = por %p39, %p40
      %p42 = scmp.ne.s32.totalorder %s31, %s34
      %p43 = scmp.eq.s32.totalorder %s26, 1
      %p44 = por %p42, %p43
      %p45 = scmp.ne.s32.totalorder %s34, %s35
      %p46 = scmp.eq.s32.totalorder %s26, 0
      %p47 = por %p45, %p46
      %p48 = scmp.ne.s32.totalorder %s34, %s35
      %p49 = scmp.eq.s32.totalorder %s27, 1
      %p50 = por %p48, %p49
      %p52 = scmp.ne.s32.totalorder %s35, %s51
      %p53 = scmp.eq.s32.totalorder %s27, 0
      %p54 = por %p52, %p53
      %s55 = ssub.s32 %s21, %s28
      %p56 = scmp.eq.s32.totalorder %s55, 0
      %s58 = sadd.s32 %s57, 1
      %s59 = scalar_select %p56, %s57, %s58
      %p62 = pneg %p56
      %p63 = scmp.eq.s32.totalorder %s21, 1
      %p64 = por %p62, %p63
      %p65 = scmp.ne.s32.totalorder %s57, %s60
      %p66 = scmp.eq.s32.totalorder %s21, 0
      %p67 = por %p65, %p66
      %p68 = scmp.ne.s32.totalorder %s57, %s60
      %p69 = scmp.eq.s32.totalorder %s26, 1
      %p70 = por %p68, %p69
      %p71 = scmp.ne.s32.totalorder %s60, %s61
      %p72 = scmp.eq.s32.totalorder %s26, 0
      %p73 = por %p71, %p72
      %p74 = scmp.ne.s32.totalorder %s60, %s61
      %p75 = scmp.eq.s32.totalorder %s27, 1
      %p76 = por %p74, %p75
      %p78 = scmp.ne.s32.totalorder %s61, %s77
      %p79 = scmp.eq.s32.totalorder %s27, 0
      %p80 = por %p78, %p79
      %s82 = sadd.s32 %s81, 1
      %p85 = scmp.eq.s32.totalorder %s21, 1
      %p86 = scmp.ne.s32.totalorder %s81, %s83
      %p87 = scmp.eq.s32.totalorder %s21, 0
      %p88 = por %p86, %p87
      %p89 = scmp.ne.s32.totalorder %s81, %s83
      %p90 = scmp.eq.s32.totalorder %s26, 1
      %p91 = por %p89, %p90
      %p92 = scmp.ne.s32.totalorder %s83, %s84
      %p93 = scmp.eq.s32.totalorder %s26, 0
      %p94 = por %p92, %p93
      %p95 = scmp.ne.s32.totalorder %s83, %s84
      %p96 = scmp.eq.s32.totalorder %s27, 1
      %p97 = por %p95, %p96
      %p99 = scmp.ne.s32.totalorder %s84, %s98
      %p100 = scmp.eq.s32.totalorder %s27, 0
      %p101 = por %p99, %p100
      %s103 = sadd.s32 %s102, 1
      %p106 = scmp.eq.s32.totalorder %s21, 1
      %p107 = scmp.ne.s32.totalorder %s102, %s104
      %p108 = scmp.eq.s32.totalorder %s21, 0
      %p109 = por %p107, %p108
      %p110 = scmp.ne.s32.totalorder %s102, %s104
      %p111 = scmp.eq.s32.totalorder %s26, 1
      %p112 = por %p110, %p111
      %p113 = scmp.ne.s32.totalorder %s104, %s105
      %p114 = scmp.eq.s32.totalorder %s26, 0
      %p115 = por %p113, %p114
      %p116 = scmp.ne.s32.totalorder %s104, %s105
      %p117 = scmp.eq.s32.totalorder %s27, 1
      %p118 = por %p116, %p117
      %p120 = scmp.ne.s32.totalorder %s105, %s119
      %p121 = scmp.eq.s32.totalorder %s27, 0
      %p122 = por %p120, %p121
      %s124 = sadd.s32 %s123, 1
      %p127 = scmp.eq.s32.totalorder %s21, 1
      %p128 = scmp.ne.s32.totalorder %s123, %s125
      %p129 = scmp.eq.s32.totalorder %s21, 0
      %p130 = por %p128, %p129
      %p131 = scmp.ne.s32.totalorder %s123, %s125
      %p132 = scmp.eq.s32.totalorder %s26, 1
      %p133 = por %p131, %p132
      %p134 = scmp.ne.s32.totalorder %s125, %s126
      %p135 = scmp.eq.s32.totalorder %s26, 0
      %p136 = por %p134, %p135
      %p137 = scmp.ne.s32.totalorder %s125, %s126
      %p138 = scmp.eq.s32.totalorder %s27, 1
      %p139 = por %p137, %p138
      %p141 = scmp.ne.s32.totalorder %s126, %s140
      %p142 = scmp.eq.s32.totalorder %s27, 0
      %p143 = por %p141, %p142
      %s144 = ssub.s32 %s21, %s28
      %p145 = scmp.eq.s32.totalorder %s144, 0
      %s147 = sadd.s32 %s146, 1
      %s148 = scalar_select %p145, %s146, %s147
      %p151 = pneg %p145
      %p152 = scmp.eq.s32.totalorder %s21, 1
      %p153 = por %p151, %p152
      %p154 = scmp.ne.s32.totalorder %s146, %s149
      %p155 = scmp.eq.s32.totalorder %s21, 0
      %p156 = por %p154, %p155
      %p157 = scmp.ne.s32.totalorder %s146, %s149
      %p158 = scmp.eq.s32.totalorder %s26, 1
      %p159 = por %p157, %p158
      %p160 = scmp.ne.s32.totalorder %s149, %s150
      %p161 = scmp.eq.s32.totalorder %s26, 0
      %p162 = por %p160, %p161
      %p163 = scmp.ne.s32.totalorder %s149, %s150
      %p164 = scmp.eq.s32.totalorder %s27, 1
      %p165 = por %p163, %p164
      %p167 = scmp.ne.s32.totalorder %s150, %s166
      %p168 = scmp.eq.s32.totalorder %s27, 0
      %p169 = por %p167, %p168
      %p170 = scmp.le.s32.totalorder 1, %s21
      %p171 = scmp.lt.s32.totalorder %s21, 3
      %p172 = pnand %p170, %p171
      %p173 = pneg %p172
      // Predicated region
      $region9: #{tpu_custom_call.1} parent=5 // pred_check
        _
      $region10: #{tpu_custom_call.1} parent=5 // pred_check_branch
        %175 = sbr.rel (%p172) target = $region12
      $region11: #{tpu_custom_call.1} parent=5 // pred_region
        %s176 = ssub.s32 %s21, 1
        // Predicated region
        $region13: #{tpu_custom_call.1} parent=11 // pred_check
          %p177 = pneg %p94
        $region14: #{tpu_custom_call.1} parent=11 // pred_check_branch
          %179 = sbr.rel (%p177) target = $region16
        $region15: #{tpu_custom_call.1} parent=11 // pred_region
          %181 = vsyncadd [#allocation7], 0
          %s182 = sshll.u32 %s2, 4
          %s183 = int_to_ptr.hbm [resolvable:$true] %s182
          %s184 = sshll.u32 [#allocation8], 4
          %s185 = int_to_ptr.vmem [resolvable:$true] %s184
          %190 = dma.hbm_to_vmem [thread:$0]  %s183, 2048, %s185, [#allocation7], 128, 128, 8
        $region16: #{tpu_custom_call.1} parent=11 // pred_fallthru
          _
        // Predicated region
        $region17: #{tpu_custom_call.1} parent=11 // pred_check
          %p191 = pneg %p115
        $region18: #{tpu_custom_call.1} parent=11 // pred_check_branch
          %193 = sbr.rel (%p191) target = $region20
        $region19: #{tpu_custom_call.1} parent=11 // pred_region
          _
        $region20: #{tpu_custom_call.1} parent=11 // pred_fallthru
          _
        // Predicated region
        $region21: #{tpu_custom_call.1} parent=11 // pred_check
          %p194 = pneg %p136
        $region22: #{tpu_custom_call.1} parent=11 // pred_check_branch
          %196 = sbr.rel (%p194) target = $region24
        $region23: #{tpu_custom_call.1} parent=11 // pred_region
          _
        $region24: #{tpu_custom_call.1} parent=11 // pred_fallthru
          _
      $region12: #{tpu_custom_call.1} parent=5 // pred_fallthru
        _
      %p197 = scmp.lt.s32.totalorder %s21, 2
      // Predicated region
      $region25: #{tpu_custom_call.1} parent=5 // pred_check
        %p198 = pneg %p197
      $region26: #{tpu_custom_call.1} parent=5 // pred_check_branch
        %200 = sbr.rel (%p198) target = $region28
      $region27: #{tpu_custom_call.1} parent=5 // pred_region
        // Predicated region
        $region29: #{tpu_custom_call.1} parent=27 // pred_check
          %p201 = pneg %p41
        $region30: #{tpu_custom_call.1} parent=27 // pred_check_branch
          %203 = sbr.rel (%p201) target = $region32
        $region31: #{tpu_custom_call.1} parent=27 // pred_region
          %s204 = sand.u32 %s31, 1
          %s205 = scalar_lea.sflag [#allocation4], %s204
          %s206 = sand.u32 %s31, 1
          %s207 = smul.addr %s206, 64
          %s208 = scalar_lea.vmem [#allocation3], %s207
          %s209 = smul.u32 8, %s21
          %211 = vsyncadd %s205, 0
          %s212 = smul.addr %s209, 8
          %s213 = scalar_lea.hbm %s0, %s212
          %s214 = sshll.u32 %s213, 4
          %s215 = int_to_ptr.hbm [resolvable:$true] %s214
          %s216 = sshll.u32 %s208, 4
          %s217 = int_to_ptr.vmem [resolvable:$true] %s216
          %222 = dma.hbm_to_vmem [thread:$0]  %s215, 1024, %s217, %s205, 128, 128, 8
        $region32: #{tpu_custom_call.1} parent=27 // pred_fallthru
          _
        // Predicated region
        $region33: #{tpu_custom_call.1} parent=27 // pred_check
          %p223 = pneg %p67
        $region34: #{tpu_custom_call.1} parent=27 // pred_check_branch
          %225 = sbr.rel (%p223) target = $region36
        $region35: #{tpu_custom_call.1} parent=27 // pred_region
          %s226 = sand.u32 %s21, 1
          %s227 = scalar_lea.sflag [#allocation7], %s226
          %s228 = sand.u32 %s57, 1
          %s229 = smul.addr %s228, 8
          %s230 = scalar_lea.vmem [#allocation6], %s229
          %232 = vsyncadd %s227, 0
          %s233 = smul.addr %s21, 8
          %s234 = scalar_lea.hbm %s1, %s233
          %s236 = sshll.u32 %s234, 4
          %s237 = int_to_ptr.hbm [resolvable:$true] %s236
          %s238 = sshll.u32 %s230, 4
          %s239 = int_to_ptr.vmem [resolvable:$true] %s238
          %241 = dma.hbm_to_vmem [thread:$0]  %s237, 128, %s239, %s227
        $region36: #{tpu_custom_call.1} parent=27 // pred_fallthru
          _
      $region28: #{tpu_custom_call.1} parent=5 // pred_fallthru
        _
      %p242 = scmp.le.s32.totalorder 1, %s21
      %p243 = scmp.lt.s32.totalorder %s21, 3
      %p244 = pnand %p242, %p243
      %p245 = pneg %p244
      // Predicated region
      $region37: #{tpu_custom_call.1} parent=5 // pred_check
        _
      $region38: #{tpu_custom_call.1} parent=5 // pred_check_branch
        %247 = sbr.rel (%p244) target = $region40
      $region39: #{tpu_custom_call.1} parent=5 // pred_region
        %s248 = ssub.s32 %s21, 1
        %s249 = sand.u32 %s34, 1
        %s250 = scalar_lea.sflag [#allocation4], %s249
        %s251 = sand.u32 %s34, 1
        %s252 = smul.addr %s251, 64
        %s253 = scalar_lea.vmem [#allocation3], %s252
        // Predicated region
        $region41: #{tpu_custom_call.1} parent=39 // pred_check
          %p254 = pneg %p47
        $region42: #{tpu_custom_call.1} parent=39 // pred_check_branch
          %256 = sbr.rel (%p254) target = $region44
        $region43: #{tpu_custom_call.1} parent=39 // pred_region
          %258 = dma.done %s250, 1024
        $region44: #{tpu_custom_call.1} parent=39 // pred_fallthru
          _
        %s259 = sand.u32 %s26, 1
        %s260 = scalar_lea.sflag [#allocation7], %s259
        %s261 = sand.u32 %s60, 1
        %s262 = smul.addr %s261, 8
        %s263 = scalar_lea.vmem [#allocation6], %s262
        // Predicated region
        $region45: #{tpu_custom_call.1} parent=39 // pred_check
          %p264 = pneg %p73
        $region46: #{tpu_custom_call.1} parent=39 // pred_check_branch
          %266 = sbr.rel (%p264) target = $region48
        $region47: #{tpu_custom_call.1} parent=39 // pred_region
          %268 = dma.done %s260, 128
        $region48: #{tpu_custom_call.1} parent=39 // pred_fallthru
          _
        // Predicated region
        $region49: #{tpu_custom_call.1} parent=39 // pred_check
          %p269 = pneg %p94
        $region50: #{tpu_custom_call.1} parent=39 // pred_check_branch
          %271 = sbr.rel (%p269) target = $region52
        $region51: #{tpu_custom_call.1} parent=39 // pred_region
          %273 = dma.done [#allocation7], 2048
        $region52: #{tpu_custom_call.1} parent=39 // pred_fallthru
          _
        %s274 = sand.u32 %s34, 1
        %s275 = scalar_lea.sflag [#allocation4], %s274
        %s276 = sand.u32 %s34, 1
        %s277 = smul.addr %s276, 64
        %s278 = scalar_lea.vmem [#allocation3], %s277
        %p279 = pneg %p47
        %p280 = pneg %p44
        %s281 = sand.u32 %s26, 1
        %s282 = scalar_lea.sflag [#allocation7], %s281
        %s283 = sand.u32 %s60, 1
        %s284 = smul.addr %s283, 8
        %s285 = scalar_lea.vmem [#allocation6], %s284
        %p286 = pneg %p73
        %p287 = pneg %p70
        %p288 = pneg %p94
        %p289 = pneg %p91
        %p290 = pneg %p115
        %p291 = pneg %p112
        %p292 = pneg %p136
        %p293 = pneg %p133
        %p294 = pneg %p162
        %p295 = pneg %p159
        %s296 = sand.u32 %s149, 1
        %s297 = scalar_lea.sflag [#allocation5], %s296
        %s298 = sand.u32 %s149, 1
        %s299 = smul.addr %s298, 8
        %s300 = scalar_lea.vmem [#allocation9], %s299
        %s301 = smul.u32 8, %s26
        %v302 = vld [vmem:[%s253] sm:$0xff]
        %v303 = vld [vmem:[%s253 + $0x8] sm:$0xff]
        %v304 = vld [vmem:[%s253 + $0x10] sm:$0xff]
        %v305 = vld [vmem:[%s253 + $0x18] sm:$0xff]
        %v306 = vld [vmem:[%s253 + $0x20] sm:$0xff]
        %v307 = vld [vmem:[%s253 + $0x28] sm:$0xff]
        %v308 = vld [vmem:[%s253 + $0x30] sm:$0xff]
        %v309 = vld [vmem:[%s253 + $0x38] sm:$0xff]
        %v310 = vld [vmem:[#allocation8] sm:$0xff]
        %v311 = vld [vmem:[#allocation8 + $0x8] sm:$0xff]
        %v312 = vld [vmem:[#allocation8 + $0x10] sm:$0xff]
        %v313 = vld [vmem:[#allocation8 + $0x18] sm:$0xff]
        %v314 = vld [vmem:[#allocation8 + $0x20] sm:$0xff]
        %v315 = vld [vmem:[#allocation8 + $0x28] sm:$0xff]
        %v316 = vld [vmem:[#allocation8 + $0x30] sm:$0xff]
        %v317 = vld [vmem:[#allocation8 + $0x38] sm:$0xff]
        %v318 = vld [vmem:[#allocation8 + $0x40] sm:$0xff]
        %v319 = vld [vmem:[#allocation8 + $0x48] sm:$0xff]
        %v320 = vld [vmem:[#allocation8 + $0x50] sm:$0xff]
        %v321 = vld [vmem:[#allocation8 + $0x58] sm:$0xff]
        %v322 = vld [vmem:[#allocation8 + $0x60] sm:$0xff]
        %v323 = vld [vmem:[#allocation8 + $0x68] sm:$0xff]
        %v324 = vld [vmem:[#allocation8 + $0x70] sm:$0xff]
        %v325 = vld [vmem:[#allocation8 + $0x78] sm:$0xff]
        %v326 = vld [vmem:[%s3] sm:$0x1]
        %v328 = vperm.slane %v326, 0
        %330 = vmatpush.msra.mxu0 %v325
        %331 = vmatpush.msra.mxu0 %v324
        %332 = vmatpush.msra.mxu0 %v323
        %333 = vmatpush.msra.mxu0 %v322
        %334 = vmatpush.msra.mxu0 %v321
        %335 = vmatpush.msra.mxu0 %v320
        %336 = vmatpush.msra.mxu0 %v319
        %337 = vmatpush.msra.mxu0 %v318
        %338 = vmatpush.msra.mxu0 %v317
        %339 = vmatpush.msra.mxu0 %v316
        %340 = vmatpush.msra.mxu0 %v315
        %341 = vmatpush.msra.mxu0 %v314
        %342 = vmatpush.msra.mxu0 %v313
        %343 = vmatpush.msra.mxu0 %v312
        %344 = vmatpush.msra.mxu0 %v311
        %345 = vmatpush.msra.mxu0 %v310
        %346 = vmatmul.f32.gmra.mxu0 %v302
        %v347 = vpop.f32.mrf.mxu0
        %v348 = vadd.f32 %v328, %v347
        %349 = vmatmul.f32.gmra.mxu0 %v303
        %v350 = vpop.f32.mrf.mxu0
        %v351 = vadd.f32 %v328, %v350
        %352 = vmatmul.f32.gmra.mxu0 %v304
        %v353 = vpop.f32.mrf.mxu0
        %v354 = vadd.f32 %v328, %v353
        %355 = vmatmul.f32.gmra.mxu0 %v305
        %v356 = vpop.f32.mrf.mxu0
        %v357 = vadd.f32 %v328, %v356
        %358 = vmatmul.f32.gmra.mxu0 %v306
        %v359 = vpop.f32.mrf.mxu0
        %v360 = vadd.f32 %v328, %v359
        %361 = vmatmul.f32.gmra.mxu0 %v307
        %v362 = vpop.f32.mrf.mxu0
        %v363 = vadd.f32 %v328, %v362
        %364 = vmatmul.f32.gmra.mxu0 %v308
        %v365 = vpop.f32.mrf.mxu0
        %v366 = vadd.f32 %v328, %v365
        %367 = vmatmul.f32.gmra.mxu0 %v309
        %v368 = vpop.f32.mrf.mxu0
        %v369 = vadd.f32 %v328, %v368
        %370 = vdwg.mxu0
        %v371 = vtanh.pop %v348
        %v372 = vtanh.pop %v351
        %v373 = vtanh.pop %v354
        %v374 = vtanh.pop %v357
        %v375 = vtanh.pop %v360
        %v376 = vtanh.pop %v363
        %v377 = vtanh.pop %v366
        %v378 = vtanh.pop %v369
        %v379 = vld [vmem:[%s263] sm:$0xff]
        %v381 = vrot.slane %v379, 1
        %v382 = vrot.slane %v379, 2
        %v383 = vrot.slane %v379, 3
        %v384 = vrot.slane %v379, 4
        %v385 = vrot.slane %v379, 5
        %v386 = vrot.slane %v379, 6
        %v387 = vrot.slane %v379, 7
        %v388 = vperm.slane %v379, 0
        %v389 = vperm.slane %v381, 0
        %v390 = vperm.slane %v382, 0
        %v391 = vperm.slane %v383, 0
        %v392 = vperm.slane %v384, 0
        %v393 = vperm.slane %v385, 0
        %v394 = vperm.slane %v386, 0
        %v395 = vperm.slane %v387, 0
        %v404 = vmul.f32 %v371, %v388
        %v405 = vmul.f32 %v372, %v389
        %v406 = vmul.f32 %v373, %v390
        %v407 = vmul.f32 %v374, %v391
        %v408 = vmul.f32 %v375, %v392
        %v409 = vmul.f32 %v376, %v393
        %v410 = vmul.f32 %v377, %v394
        %v411 = vmul.f32 %v378, %v395
        %412 = vadd.xlane.f32.xlu0 %v404
        %v413 = vpop.xlane.xlu0 %412
        %414 = vadd.xlane.f32.xlu0 %v405
        %v415 = vpop.xlane.xlu0 %414
        %416 = vadd.xlane.f32.xlu0 %v406
        %v417 = vpop.xlane.xlu0 %416
        %418 = vadd.xlane.f32.xlu0 %v407
        %v419 = vpop.xlane.xlu0 %418
        %420 = vadd.xlane.f32.xlu0 %v408
        %v421 = vpop.xlane.xlu0 %420
        %422 = vadd.xlane.f32.xlu0 %v409
        %v423 = vpop.xlane.xlu0 %422
        %424 = vadd.xlane.f32.xlu0 %v410
        %v425 = vpop.xlane.xlu0 %424
        %426 = vadd.xlane.f32.xlu0 %v411
        %v427 = vpop.xlane.xlu0 %426
        %s428 = sld [smem:[#allocation2]]
        %v429 = vstv %s428
        %v430 = vadd.f32 %v413, %v429
        %v431 = vadd.f32 %v415, %v429
        %v432 = vadd.f32 %v417, %v429
        %v433 = vadd.f32 %v419, %v429
        %v434 = vadd.f32 %v421, %v429
        %v435 = vadd.f32 %v423, %v429
        %v436 = vadd.f32 %v425, %v429
        %v437 = vadd.f32 %v427, %v429
        %v446 = vlaneseq
        %v447 = vand.u32 %v446, 127
        %v448 = vperm.slane %v430, %v447
        %v449 = vperm.slane %v431, %v447
        %v450 = vperm.slane %v432, %v447
        %v451 = vperm.slane %v433, %v447
        %v452 = vperm.slane %v434, %v447
        %v453 = vperm.slane %v435, %v447
        %v454 = vperm.slane %v436, %v447
        %v455 = vperm.slane %v437, %v447
        %vm456 = vcmask 1041409
        %v457 = vsel %vm456, %v449, %v448
        %vm458 = vcmask 1042434
        %v459 = vsel %vm458, %v450, %v457
        %vm460 = vcmask 1043459
        %v461 = vsel %vm460, %v451, %v459
        %vm462 = vcmask 1044484
        %v463 = vsel %vm462, %v452, %v461
        %vm464 = vcmask 1045509
        %v465 = vsel %vm464, %v453, %v463
        %vm466 = vcmask 1046534
        %v467 = vsel %vm466, %v454, %v465
        %vm468 = vcmask 1047559
        %v469 = vsel %vm468, %v455, %v467
        %vm471 = vcmask 64512
        %v472 = vsel %vm471, %v469, -inf
        %473 = vmax.xlane.f32.xlu0 %v472
        %v474 = vpop.xlane.xlu0 %473
        %v476 = vperm.slane %v474, 0
        %v477 = vperm.slane %v474, 1
        %v478 = vperm.slane %v474, 2
        %v479 = vperm.slane %v474, 3
        %v480 = vperm.slane %v474, 4
        %v481 = vperm.slane %v474, 5
        %v482 = vperm.slane %v474, 6
        %v483 = vperm.slane %v474, 7
        %v492 = vsub.f32 %v430, %v476
        %v493 = vsub.f32 %v431, %v477
        %v494 = vsub.f32 %v432, %v478
        %v495 = vsub.f32 %v433, %v479
        %v496 = vsub.f32 %v434, %v480
        %v497 = vsub.f32 %v435, %v481
        %v498 = vsub.f32 %v436, %v482
        %v499 = vsub.f32 %v437, %v483
        %v500 = vmul.f32 %v492, 1.442695
        %v501 = vpow.pop %v500
        %v502 = vmul.f32 %v493, 1.442695
        %v503 = vpow.pop %v502
        %v504 = vmul.f32 %v494, 1.442695
        %v505 = vpow.pop %v504
        %v506 = vmul.f32 %v495, 1.442695
        %v507 = vpow.pop %v506
        %v508 = vmul.f32 %v496, 1.442695
        %v509 = vpow.pop %v508
        %v510 = vmul.f32 %v497, 1.442695
        %v511 = vpow.pop %v510
        %v512 = vmul.f32 %v498, 1.442695
        %v513 = vpow.pop %v512
        %v514 = vmul.f32 %v499, 1.442695
        %v515 = vpow.pop %v514
        %524 = vset.pattern.permute.xlu0 0
        %525 = vperm.xlu0 %524, %v501
        %v526 = vpop.permute.xlu0 %525
        %527 = vset.pattern.permute.xlu0 0
        %528 = vperm.xlu0 %527, %v503
        %v529 = vpop.permute.xlu0 %528
        %530 = vset.pattern.permute.xlu0 0
        %531 = vperm.xlu0 %530, %v505
        %v532 = vpop.permute.xlu0 %531
        %533 = vset.pattern.permute.xlu0 0
        %534 = vperm.xlu0 %533, %v507
        %v535 = vpop.permute.xlu0 %534
        %536 = vset.pattern.permute.xlu0 0
        %537 = vperm.xlu0 %536, %v509
        %v538 = vpop.permute.xlu0 %537
        %539 = vset.pattern.permute.xlu0 0
        %540 = vperm.xlu0 %539, %v511
        %v541 = vpop.permute.xlu0 %540
        %542 = vset.pattern.permute.xlu0 0
        %543 = vperm.xlu0 %542, %v513
        %v544 = vpop.permute.xlu0 %543
        %545 = vset.pattern.permute.xlu0 0
        %546 = vperm.xlu0 %545, %v515
        %v547 = vpop.permute.xlu0 %546
        %v548 = vperm.slane %v526, %v447
        %v549 = vperm.slane %v529, %v447
        %v550 = vperm.slane %v532, %v447
        %v551 = vperm.slane %v535, %v447
        %v552 = vperm.slane %v538, %v447
        %v553 = vperm.slane %v541, %v447
        %v554 = vperm.slane %v544, %v447
        %v555 = vperm.slane %v547, %v447
        %v556 = vsel %vm456, %v549, %v548
        %v557 = vsel %vm458, %v550, %v556
        %v558 = vsel %vm460, %v551, %v557
        %v559 = vsel %vm462, %v552, %v558
        %v560 = vsel %vm464, %v553, %v559
        %v561 = vsel %vm466, %v554, %v560
        %v562 = vsel %vm468, %v555, %v561
        %v564 = vsel %vm471, %v562, 0.0
        %565 = vadd.xlane.f32.xlu0 %v564
        %v566 = vpop.xlane.xlu0 %565
        %v568 = vperm.slane %v566, 0
        %v569 = vperm.slane %v566, 1
        %v570 = vperm.slane %v566, 2
        %v571 = vperm.slane %v566, 3
        %v572 = vperm.slane %v566, 4
        %v573 = vperm.slane %v566, 5
        %v574 = vperm.slane %v566, 6
        %v575 = vperm.slane %v566, 7
        %v584 = vrcp.pop %v568
        %v585 = vmul.f32 %v568, %v584
        %v586 = vsub.f32 1.0, %v585
        %v587 = vmul.f32 %v584, %v586
        %v588 = vadd.f32 %v584, %v587
        %vm589 = vweird.f32 %v568
        %vm590 = vweird.f32 %v584
        %vm591 = vmor %vm589, %vm590
        %v592 = vsel %vm591, %v584, %v588
        %v593 = vand.u32 2147483647, %v568
        %vm594 = vcmp.eq.f32.partialorder %v593, 8.507059e+37
        %v595 = vand.u32 %v568, 2147483648
        %v596 = vor.u32 1.1754944e-38, %v595
        %v597 = vsel %vm594, %v596, %v592
        %v598 = vmul.f32 %v501, %v597
        %v599 = vrcp.pop %v569
        %v600 = vmul.f32 %v569, %v599
        %v601 = vsub.f32 1.0, %v600
        %v602 = vmul.f32 %v599, %v601
        %v603 = vadd.f32 %v599, %v602
        %vm604 = vweird.f32 %v569
        %vm605 = vweird.f32 %v599
        %vm606 = vmor %vm604, %vm605
        %v607 = vsel %vm606, %v599, %v603
        %v608 = vand.u32 2147483647, %v569
        %vm609 = vcmp.eq.f32.partialorder %v608, 8.507059e+37
        %v610 = vand.u32 %v569, 2147483648
        %v611 = vor.u32 1.1754944e-38, %v610
        %v612 = vsel %vm609, %v611, %v607
        %v613 = vmul.f32 %v503, %v612
        %v614 = vrcp.pop %v570
        %v615 = vmul.f32 %v570, %v614
        %v616 = vsub.f32 1.0, %v615
        %v617 = vmul.f32 %v614, %v616
        %v618 = vadd.f32 %v614, %v617
        %vm619 = vweird.f32 %v570
        %vm620 = vweird.f32 %v614
        %vm621 = vmor %vm619, %vm620
        %v622 = vsel %vm621, %v614, %v618
        %v623 = vand.u32 2147483647, %v570
        %vm624 = vcmp.eq.f32.partialorder %v623, 8.507059e+37
        %v625 = vand.u32 %v570, 2147483648
        %v626 = vor.u32 1.1754944e-38, %v625
        %v627 = vsel %vm624, %v626, %v622
        %v628 = vmul.f32 %v505, %v627
        %v629 = vrcp.pop %v571
        %v630 = vmul.f32 %v571, %v629
        %v631 = vsub.f32 1.0, %v630
        %v632 = vmul.f32 %v629, %v631
        %v633 = vadd.f32 %v629, %v632
        %vm634 = vweird.f32 %v571
        %vm635 = vweird.f32 %v629
        %vm636 = vmor %vm634, %vm635
        %v637 = vsel %vm636, %v629, %v633
        %v638 = vand.u32 2147483647, %v571
        %vm639 = vcmp.eq.f32.partialorder %v638, 8.507059e+37
        %v640 = vand.u32 %v571, 2147483648
        %v641 = vor.u32 1.1754944e-38, %v640
        %v642 = vsel %vm639, %v641, %v637
        %v643 = vmul.f32 %v507, %v642
        %v644 = vrcp.pop %v572
        %v645 = vmul.f32 %v572, %v644
        %v646 = vsub.f32 1.0, %v645
        %v647 = vmul.f32 %v644, %v646
        %v648 = vadd.f32 %v644, %v647
        %vm649 = vweird.f32 %v572
        %vm650 = vweird.f32 %v644
        %vm651 = vmor %vm649, %vm650
        %v652 = vsel %vm651, %v644, %v648
        %v653 = vand.u32 2147483647, %v572
        %vm654 = vcmp.eq.f32.partialorder %v653, 8.507059e+37
        %v655 = vand.u32 %v572, 2147483648
        %v656 = vor.u32 1.1754944e-38, %v655
        %v657 = vsel %vm654, %v656, %v652
        %v658 = vmul.f32 %v509, %v657
        %v659 = vrcp.pop %v573
        %v660 = vmul.f32 %v573, %v659
        %v661 = vsub.f32 1.0, %v660
        %v662 = vmul.f32 %v659, %v661
        %v663 = vadd.f32 %v659, %v662
        %vm664 = vweird.f32 %v573
        %vm665 = vweird.f32 %v659
        %vm666 = vmor %vm664, %vm665
        %v667 = vsel %vm666, %v659, %v663
        %v668 = vand.u32 2147483647, %v573
        %vm669 = vcmp.eq.f32.partialorder %v668, 8.507059e+37
        %v670 = vand.u32 %v573, 2147483648
        %v671 = vor.u32 1.1754944e-38, %v670
        %v672 = vsel %vm669, %v671, %v667
        %v673 = vmul.f32 %v511, %v672
        %v674 = vrcp.pop %v574
        %v675 = vmul.f32 %v574, %v674
        %v676 = vsub.f32 1.0, %v675
        %v677 = vmul.f32 %v674, %v676
        %v678 = vadd.f32 %v674, %v677
        %vm679 = vweird.f32 %v574
        %vm680 = vweird.f32 %v674
        %vm681 = vmor %vm679, %vm680
        %v682 = vsel %vm681, %v674, %v678
        %v683 = vand.u32 2147483647, %v574
        %vm684 = vcmp.eq.f32.partialorder %v683, 8.507059e+37
        %v685 = vand.u32 %v574, 2147483648
        %v686 = vor.u32 1.1754944e-38, %v685
        %v687 = vsel %vm684, %v686, %v682
        %v688 = vmul.f32 %v513, %v687
        %v689 = vrcp.pop %v575
        %v690 = vmul.f32 %v575, %v689
        %v691 = vsub.f32 1.0, %v690
        %v692 = vmul.f32 %v689, %v691
        %v693 = vadd.f32 %v689, %v692
        %vm694 = vweird.f32 %v575
        %vm695 = vweird.f32 %v689
        %vm696 = vmor %vm694, %vm695
        %v697 = vsel %vm696, %v689, %v693
        %v698 = vand.u32 2147483647, %v575
        %vm699 = vcmp.eq.f32.partialorder %v698, 8.507059e+37
        %v700 = vand.u32 %v575, 2147483648
        %v701 = vor.u32 1.1754944e-38, %v700
        %v702 = vsel %vm699, %v701, %v697
        %v703 = vmul.f32 %v515, %v702
        %705 = vset.pattern.permute.xlu0 0
        %706 = vperm.xlu0 %705, %v598
        %v707 = vpop.permute.xlu0 %706
        %710 = vset.pattern.permute.xlu0 0
        %711 = vperm.xlu0 %710, %v613
        %v712 = vpop.permute.xlu0 %711
        %715 = vset.pattern.permute.xlu0 0
        %716 = vperm.xlu0 %715, %v628
        %v717 = vpop.permute.xlu0 %716
        %720 = vset.pattern.permute.xlu0 0
        %721 = vperm.xlu0 %720, %v643
        %v722 = vpop.permute.xlu0 %721
        %725 = vset.pattern.permute.xlu0 0
        %726 = vperm.xlu0 %725, %v658
        %v727 = vpop.permute.xlu0 %726
        %730 = vset.pattern.permute.xlu0 0
        %731 = vperm.xlu0 %730, %v673
        %v732 = vpop.permute.xlu0 %731
        %735 = vset.pattern.permute.xlu0 0
        %736 = vperm.xlu0 %735, %v688
        %v737 = vpop.permute.xlu0 %736
        %740 = vset.pattern.permute.xlu0 0
        %741 = vperm.xlu0 %740, %v703
        %v742 = vpop.permute.xlu0 %741
        %v744 = vmul.f32 %v707, %v302
        %v745 = vmul.f32 %v712, %v303
        %v746 = vmul.f32 %v717, %v304
        %v747 = vmul.f32 %v722, %v305
        %v748 = vmul.f32 %v727, %v306
        %v749 = vmul.f32 %v732, %v307
        %v750 = vmul.f32 %v737, %v308
        %v751 = vmul.f32 %v742, %v309
        %v752 = vrot.slane %v744, 4
        %v753 = vadd.f32 %v744, %v752
        %v754 = vrot.slane %v753, 2
        %v755 = vadd.f32 %v753, %v754
        %v756 = vrot.slane %v755, 1
        %v757 = vadd.f32 %v755, %v756
        %v758 = vrot.slane %v745, 4
        %v759 = vadd.f32 %v745, %v758
        %v760 = vrot.slane %v759, 2
        %v761 = vadd.f32 %v759, %v760
        %v762 = vrot.slane %v761, 1
        %v763 = vadd.f32 %v761, %v762
        %v764 = vrot.slane %v746, 4
        %v765 = vadd.f32 %v746, %v764
        %v766 = vrot.slane %v765, 2
        %v767 = vadd.f32 %v765, %v766
        %v768 = vrot.slane %v767, 1
        %v769 = vadd.f32 %v767, %v768
        %v770 = vrot.slane %v747, 4
        %v771 = vadd.f32 %v747, %v770
        %v772 = vrot.slane %v771, 2
        %v773 = vadd.f32 %v771, %v772
        %v774 = vrot.slane %v773, 1
        %v775 = vadd.f32 %v773, %v774
        %v776 = vrot.slane %v748, 4
        %v777 = vadd.f32 %v748, %v776
        %v778 = vrot.slane %v777, 2
        %v779 = vadd.f32 %v777, %v778
        %v780 = vrot.slane %v779, 1
        %v781 = vadd.f32 %v779, %v780
        %v782 = vrot.slane %v749, 4
        %v783 = vadd.f32 %v749, %v782
        %v784 = vrot.slane %v783, 2
        %v785 = vadd.f32 %v783, %v784
        %v786 = vrot.slane %v785, 1
        %v787 = vadd.f32 %v785, %v786
        %v788 = vrot.slane %v750, 4
        %v789 = vadd.f32 %v750, %v788
        %v790 = vrot.slane %v789, 2
        %v791 = vadd.f32 %v789, %v790
        %v792 = vrot.slane %v791, 1
        %v793 = vadd.f32 %v791, %v792
        %v794 = vrot.slane %v751, 4
        %v795 = vadd.f32 %v751, %v794
        %v796 = vrot.slane %v795, 2
        %v797 = vadd.f32 %v795, %v796
        %v798 = vrot.slane %v797, 1
        %v799 = vadd.f32 %v797, %v798
        %v808 = vsel %vm456, %v763, %v757
        %v809 = vsel %vm458, %v769, %v808
        %v810 = vsel %vm460, %v775, %v809
        %v811 = vsel %vm462, %v781, %v810
        %v812 = vsel %vm464, %v787, %v811
        %v813 = vsel %vm466, %v793, %v812
        %v814 = vsel %vm468, %v799, %v813
        %816 = vst [vmem:[%s300] sm:$0xff] %v814
        %s817 = sand.u32 %s149, 1
        %s818 = scalar_lea.sflag [#allocation5], %s817
        %s819 = sand.u32 %s149, 1
        %s820 = smul.addr %s819, 8
        %s821 = scalar_lea.vmem [#allocation9], %s820
        // Predicated region
        $region53: #{tpu_custom_call.1} parent=39 // pred_check
          %p822 = pneg %p159
        $region54: #{tpu_custom_call.1} parent=39 // pred_check_branch
          %824 = sbr.rel (%p822) target = $region56
        $region55: #{tpu_custom_call.1} parent=39 // pred_region
          %826 = vsyncadd %s818, 0
          %s827 = smul.addr %s26, 8
          %s828 = scalar_lea.hbm %s5, %s827
          %s830 = sshll.u32 %s821, 4
          %s831 = int_to_ptr.vmem [resolvable:$true] %s830
          %s832 = sshll.u32 %s828, 4
          %s833 = int_to_ptr.hbm [resolvable:$true] %s832
          %835 = dma.vmem_to_hbm [thread:$0]  %s831, 128, %s833, %s818
        $region56: #{tpu_custom_call.1} parent=39 // pred_fallthru
          _
      $region40: #{tpu_custom_call.1} parent=5 // pred_fallthru
        _
      %p836 = scmp.le.s32.totalorder 2, %s21
      // Predicated region
      $region57: #{tpu_custom_call.1} parent=5 // pred_check
        %p837 = pneg %p836
      $region58: #{tpu_custom_call.1} parent=5 // pred_check_branch
        %839 = sbr.rel (%p837) target = $region60
      $region59: #{tpu_custom_call.1} parent=5 // pred_region
        %s840 = ssub.s32 %s21, 2
        // Predicated region
        $region61: #{tpu_custom_call.1} parent=59 // pred_check
          %p841 = pneg %p165
        $region62: #{tpu_custom_call.1} parent=59 // pred_check_branch
          %843 = sbr.rel (%p841) target = $region64
        $region63: #{tpu_custom_call.1} parent=59 // pred_region
          %s844 = sand.u32 %s150, 1
          %s845 = scalar_lea.sflag [#allocation5], %s844
          %s846 = sand.u32 %s150, 1
          %s847 = smul.addr %s846, 8
          %s848 = scalar_lea.vmem [#allocation9], %s847
          %850 = dma.done %s845, 128
        $region64: #{tpu_custom_call.1} parent=59 // pred_fallthru
          _
      $region60: #{tpu_custom_call.1} parent=5 // pred_fallthru
        _
    $region6: #{tpu_custom_call.1} parent=1 // loop_footer
      %s25 = sadd.s32 1, %s21
    $region7: #{tpu_custom_call.1} parent=1 // loop_footer_branch
      %20 = sbr.rel target = $region3
    $region8: #{tpu_custom_call.1} parent=1 // loop_exit
      _
    %851 = vsyncpa [#allocation4], 1
    %s852 = scalar_lea.sflag [#allocation4], 1
    %853 = vsyncpa %s852, 1
    %854 = vsyncpa [#allocation7], 1
    %s855 = scalar_lea.sflag [#allocation7], 1
    %856 = vsyncpa %s855, 1
    %857 = vsyncpa [#allocation5], 1
    %s858 = scalar_lea.sflag [#allocation5], 1
    %859 = vsyncpa %s858, 1

// kernel: tpu_custom_call.1
$region0: #{tpu_custom_call.1}
  #allocation0 [shape = 'u32[]', space=smem, size = 0x4, offset = 0x4, fixed_abs, tag = 'smem constant byte address 0x4 - core index']
  #allocation1 [shape = 'u32[72,128]{1,0:T(1,128)}', space=vmem, size = 0x9000, scoped, tag = 'internal scratch']
  #allocation2 [shape = 'f32[1,1]{1,0:T(1,128)S(6)}', space=smem, size = 0x200, scoped, tag = 'scoped memory for tpu_custom_call.1']
  %s0 = inlined_call_operand.hbm [shape: f32[16,8,128], index: 0, kind: input, shape index: {}]
  %s1 = inlined_call_operand.hbm [shape: f32[16,128], index: 1, kind: input, shape index: {}]
  %s2 = inlined_call_operand.hbm [shape: f32[128,128], index: 2, kind: input, shape index: {}]
  %s3 = inlined_call_operand.vmem [shape: f32[1,128], index: 3, kind: input, shape index: {}]
  %s4 = inlined_call_operand.<no memory space> [shape: f32[1,1], index: 4, kind: input, shape index: {}]
  %s5 = inlined_call_operand.hbm [shape: f32[16,128], index: 5, kind: output, shape index: {}]
  %s6 = sld [smem:[#allocation0]]
  $region65: #{tpu_custom_call.1} parent=0
    _
  %s8 = ssub.s32 1, %s6
  %s9 = scalar_select 0, %s8, %s6
  %10 = sst [smem:[#allocation2]] %s4
  $region1: #{tpu_custom_call.1} parent=0
    #allocation3 [shape = 'u8[65536]{0}', space=vmem, size = 0x10000, scoped, tag = 'input window, operand 0']
    #allocation4 [shape = 's32[2]{0}', space=sflag, size = 0x8, scoped, tag = 'scoped memory for tpu_custom_call.1']
    #allocation5 [shape = 's32[2]{0}', space=sflag, size = 0x8, scoped, tag = 'scoped memory for tpu_custom_call.1']
    #allocation6 [shape = 'u8[8192]{0}', space=vmem, size = 0x2000, scoped, tag = 'input window, operand 1']
    #allocation7 [shape = 's32[2]{0}', space=sflag, size = 0x8, scoped, tag = 'scoped memory for tpu_custom_call.1']
    #allocation8 [shape = 'u8[65536]{0}', space=vmem, size = 0x10000, scoped, tag = 'input window, operand 2, single buffered']
    #allocation9 [shape = 'u8[8192]{0}', space=vmem, size = 0x2000, scoped, tag = 'output window, operand 0']
    %11 = vsyncpa [#allocation4], 0
    %s12 = scalar_lea.sflag [#allocation4], 1
    %13 = vsyncpa %s12, 0
    %14 = vsyncpa [#allocation7], 0
    %s15 = scalar_lea.sflag [#allocation7], 1
    %16 = vsyncpa %s15, 0
    %17 = vsyncpa [#allocation5], 0
    %s18 = scalar_lea.sflag [#allocation5], 1
    %19 = vsyncpa %s18, 0
    loop: start=0, step=1, limit=4
    $region2: #{tpu_custom_call.1} parent=1 // loop_pre_header
      _
    $region3: #{tpu_custom_call.1} parent=1 // loop_header
      %s21 = sphi 0, %s25
      %p22 = scmp.ge.s32.totalorder %s21, 4
      %s31 = sphi 0, %s33
      %s34 = sphi 0, %s31
      %s35 = sphi 0, %s34
      %s51 = sphi 0, %s35
      %s57 = sphi 0, %s59
      %s60 = sphi 0, %s57
      %s61 = sphi 0, %s60
      %s77 = sphi 0, %s61
      %s81 = sphi 0, %s81
      %s83 = sphi 0, %s81
      %s84 = sphi 0, %s83
      %s98 = sphi 0, %s84
      %s102 = sphi 0, %s102
      %s104 = sphi 0, %s102
      %s105 = sphi 0, %s104
      %s119 = sphi 0, %s105
      %s123 = sphi 0, %s123
      %s125 = sphi 0, %s123
      %s126 = sphi 0, %s125
      %s140 = sphi 0, %s126
      %s146 = sphi 0, %s148
      %s149 = sphi 0, %s146
      %s150 = sphi 0, %s149
      %s166 = sphi 0, %s150
    $region4: #{tpu_custom_call.1} parent=1 // loop_header_branch
      %24 = sbr.rel (%p22) target = $region8
    $region5: #{tpu_custom_call.1} parent=1 // loop_body
      %s26 = ssub.s32 %s21, 1
      %s27 = ssub.s32 %s21, 2
      %s28 = sadd.s32 %s21, 1
      %s29 = ssub.s32 %s21, %s28
      %p30 = scmp.eq.s32.totalorder %s29, 0
      %s32 = sadd.s32 %s31, 1
      %s33 = scalar_select %p30, %s31, %s32
      %p36 = pneg %p30
      %p37 = scmp.eq.s32.totalorder %s21, 1
      %p38 = por %p36, %p37
      %p39 = scmp.ne.s32.totalorder %s31, %s34
      %p40 = scmp.eq.s32.totalorder %s21, 0
      %p41 = por %p39, %p40
      %p42 = scmp.ne.s32.totalorder %s31, %s34
      %p43 = scmp.eq.s32.totalorder %s26, 1
      %p44 = por %p42, %p43
      %p45 = scmp.ne.s32.totalorder %s34, %s35
      %p46 = scmp.eq.s32.totalorder %s26, 0
      %p47 = por %p45, %p46
      %p48 = scmp.ne.s32.totalorder %s34, %s35
      %p49 = scmp.eq.s32.totalorder %s27, 1
      %p50 = por %p48, %p49
      %p52 = scmp.ne.s32.totalorder %s35, %s51
      %p53 = scmp.eq.s32.totalorder %s27, 0
      %p54 = por %p52, %p53
      %s55 = ssub.s32 %s21, %s28
      %p56 = scmp.eq.s32.totalorder %s55, 0
      %s58 = sadd.s32 %s57, 1
      %s59 = scalar_select %p56, %s57, %s58
      %p62 = pneg %p56
      %p63 = scmp.eq.s32.totalorder %s21, 1
      %p64 = por %p62, %p63
      %p65 = scmp.ne.s32.totalorder %s57, %s60
      %p66 = scmp.eq.s32.totalorder %s21, 0
      %p67 = por %p65, %p66
      %p68 = scmp.ne.s32.totalorder %s57, %s60
      %p69 = scmp.eq.s32.totalorder %s26, 1
      %p70 = por %p68, %p69
      %p71 = scmp.ne.s32.totalorder %s60, %s61
      %p72 = scmp.eq.s32.totalorder %s26, 0
      %p73 = por %p71, %p72
      %p74 = scmp.ne.s32.totalorder %s60, %s61
      %p75 = scmp.eq.s32.totalorder %s27, 1
      %p76 = por %p74, %p75
      %p78 = scmp.ne.s32.totalorder %s61, %s77
      %p79 = scmp.eq.s32.totalorder %s27, 0
      %p80 = por %p78, %p79
      %s82 = sadd.s32 %s81, 1
      %p85 = scmp.eq.s32.totalorder %s21, 1
      %p86 = scmp.ne.s32.totalorder %s81, %s83
      %p87 = scmp.eq.s32.totalorder %s21, 0
      %p88 = por %p86, %p87
      %p89 = scmp.ne.s32.totalorder %s81, %s83
      %p90 = scmp.eq.s32.totalorder %s26, 1
      %p91 = por %p89, %p90
      %p92 = scmp.ne.s32.totalorder %s83, %s84
      %p93 = scmp.eq.s32.totalorder %s26, 0
      %p94 = por %p92, %p93
      %p95 = scmp.ne.s32.totalorder %s83, %s84
      %p96 = scmp.eq.s32.totalorder %s27, 1
      %p97 = por %p95, %p96
      %p99 = scmp.ne.s32.totalorder %s84, %s98
      %p100 = scmp.eq.s32.totalorder %s27, 0
      %p101 = por %p99, %p100
      %s103 = sadd.s32 %s102, 1
      %p106 = scmp.eq.s32.totalorder %s21, 1
      %p107 = scmp.ne.s32.totalorder %s102, %s104
      %p108 = scmp.eq.s32.totalorder %s21, 0
      %p109 = por %p107, %p108
      %p110 = scmp.ne.s32.totalorder %s102, %s104
      %p111 = scmp.eq.s32.totalorder %s26, 1
      %p112 = por %p110, %p111
      %p113 = scmp.ne.s32.totalorder %s104, %s105
      %p114 = scmp.eq.s32.totalorder %s26, 0
      %p115 = por %p113, %p114
      %p116 = scmp.ne.s32.totalorder %s104, %s105
      %p117 = scmp.eq.s32.totalorder %s27, 1
      %p118 = por %p116, %p117
      %p120 = scmp.ne.s32.totalorder %s105, %s119
      %p121 = scmp.eq.s32.totalorder %s27, 0
      %p122 = por %p120, %p121
      %s124 = sadd.s32 %s123, 1
      %p127 = scmp.eq.s32.totalorder %s21, 1
      %p128 = scmp.ne.s32.totalorder %s123, %s125
      %p129 = scmp.eq.s32.totalorder %s21, 0
      %p130 = por %p128, %p129
      %p131 = scmp.ne.s32.totalorder %s123, %s125
      %p132 = scmp.eq.s32.totalorder %s26, 1
      %p133 = por %p131, %p132
      %p134 = scmp.ne.s32.totalorder %s125, %s126
      %p135 = scmp.eq.s32.totalorder %s26, 0
      %p136 = por %p134, %p135
      %p137 = scmp.ne.s32.totalorder %s125, %s126
      %p138 = scmp.eq.s32.totalorder %s27, 1
      %p139 = por %p137, %p138
      %p141 = scmp.ne.s32.totalorder %s126, %s140
      %p142 = scmp.eq.s32.totalorder %s27, 0
      %p143 = por %p141, %p142
      %s144 = ssub.s32 %s21, %s28
      %p145 = scmp.eq.s32.totalorder %s144, 0
      %s147 = sadd.s32 %s146, 1
      %s148 = scalar_select %p145, %s146, %s147
      %p151 = pneg %p145
      %p152 = scmp.eq.s32.totalorder %s21, 1
      %p153 = por %p151, %p152
      %p154 = scmp.ne.s32.totalorder %s146, %s149
      %p155 = scmp.eq.s32.totalorder %s21, 0
      %p156 = por %p154, %p155
      %p157 = scmp.ne.s32.totalorder %s146, %s149
      %p158 = scmp.eq.s32.totalorder %s26, 1
      %p159 = por %p157, %p158
      %p160 = scmp.ne.s32.totalorder %s149, %s150
      %p161 = scmp.eq.s32.totalorder %s26, 0
      %p162 = por %p160, %p161
      %p163 = scmp.ne.s32.totalorder %s149, %s150
      %p164 = scmp.eq.s32.totalorder %s27, 1
      %p165 = por %p163, %p164
      %p167 = scmp.ne.s32.totalorder %s150, %s166
      %p168 = scmp.eq.s32.totalorder %s27, 0
      %p169 = por %p167, %p168
      %p170 = scmp.le.s32.totalorder 1, %s21
      %p171 = scmp.lt.s32.totalorder %s21, 3
      %p172 = pnand %p170, %p171
      %p173 = pneg %p172
      // Predicated region
      $region9: #{tpu_custom_call.1} parent=5 // pred_check
        _
      $region10: #{tpu_custom_call.1} parent=5 // pred_check_branch
        %175 = sbr.rel (%p172) target = $region12
      $region11: #{tpu_custom_call.1} parent=5 // pred_region
        %s176 = ssub.s32 %s21, 1
        // Predicated region
        $region13: #{tpu_custom_call.1} parent=11 // pred_check
          %p177 = pneg %p94
        $region14: #{tpu_custom_call.1} parent=11 // pred_check_branch
          %179 = sbr.rel (%p177) target = $region16
        $region15: #{tpu_custom_call.1} parent=11 // pred_region
          %181 = vsyncadd [#allocation7], 0
          %s182 = sshll.u32 %s2, 4
          %s183 = int_to_ptr.hbm [resolvable:$true] %s182
          %s184 = sshll.u32 [#allocation8], 4
          %s185 = int_to_ptr.vmem [resolvable:$true] %s184
          %190 = dma.hbm_to_vmem [thread:$0]  %s183, 2048, %s185, [#allocation7], 128, 128, 8
        $region16: #{tpu_custom_call.1} parent=11 // pred_fallthru
          _
        // Predicated region
        $region17: #{tpu_custom_call.1} parent=11 // pred_check
          %p191 = pneg %p115
        $region18: #{tpu_custom_call.1} parent=11 // pred_check_branch
          %193 = sbr.rel (%p191) target = $region20
        $region19: #{tpu_custom_call.1} parent=11 // pred_region
          _
        $region20: #{tpu_custom_call.1} parent=11 // pred_fallthru
          _
        // Predicated region
        $region21: #{tpu_custom_call.1} parent=11 // pred_check
          %p194 = pneg %p136
        $region22: #{tpu_custom_call.1} parent=11 // pred_check_branch
          %196 = sbr.rel (%p194) target = $region24
        $region23: #{tpu_custom_call.1} parent=11 // pred_region
          _
        $region24: #{tpu_custom_call.1} parent=11 // pred_fallthru
          _
      $region12: #{tpu_custom_call.1} parent=5 // pred_fallthru
        _
      %p197 = scmp.lt.s32.totalorder %s21, 2
      // Predicated region
      $region25: #{tpu_custom_call.1} parent=5 // pred_check
        %p198 = pneg %p197
      $region26: #{tpu_custom_call.1} parent=5 // pred_check_branch
        %200 = sbr.rel (%p198) target = $region28
      $region27: #{tpu_custom_call.1} parent=5 // pred_region
        // Predicated region
        $region29: #{tpu_custom_call.1} parent=27 // pred_check
          %p201 = pneg %p41
        $region30: #{tpu_custom_call.1} parent=27 // pred_check_branch
          %203 = sbr.rel (%p201) target = $region32
        $region31: #{tpu_custom_call.1} parent=27 // pred_region
          %s204 = sand.u32 %s31, 1
          %s205 = scalar_lea.sflag [#allocation4], %s204
          %s206 = sand.u32 %s31, 1
          %s207 = smul.addr %s206, 64
          %s208 = scalar_lea.vmem [#allocation3], %s207
          %s209 = smul.u32 8, %s21
          %211 = vsyncadd %s205, 0
          %s212 = smul.addr %s209, 8
          %s213 = scalar_lea.hbm %s0, %s212
          %s214 = sshll.u32 %s213, 4
          %s215 = int_to_ptr.hbm [resolvable:$true] %s214
          %s216 = sshll.u32 %s208, 4
          %s217 = int_to_ptr.vmem [resolvable:$true] %s216
          %222 = dma.hbm_to_vmem [thread:$0]  %s215, 1024, %s217, %s205, 128, 128, 8
        $region32: #{tpu_custom_call.1} parent=27 // pred_fallthru
          _
        // Predicated region
        $region33: #{tpu_custom_call.1} parent=27 // pred_check
          %p223 = pneg %p67
        $region34: #{tpu_custom_call.1} parent=27 // pred_check_branch
          %225 = sbr.rel (%p223) target = $region36
        $region35: #{tpu_custom_call.1} parent=27 // pred_region
          %s226 = sand.u32 %s21, 1
          %s227 = scalar_lea.sflag [#allocation7], %s226
          %s228 = sand.u32 %s57, 1
          %s229 = smul.addr %s228, 8
          %s230 = scalar_lea.vmem [#allocation6], %s229
          %232 = vsyncadd %s227, 0
          %s233 = smul.addr %s21, 8
          %s234 = scalar_lea.hbm %s1, %s233
          %s236 = sshll.u32 %s234, 4
          %s237 = int_to_ptr.hbm [resolvable:$true] %s236
          %s238 = sshll.u32 %s230, 4
          %s239 = int_to_ptr.vmem [resolvable:$true] %s238
          %241 = dma.hbm_to_vmem [thread:$0]  %s237, 128, %s239, %s227
        $region36: #{tpu_custom_call.1} parent=27 // pred_fallthru
          _
      $region28: #{tpu_custom_call.1} parent=5 // pred_fallthru
        _
      %p242 = scmp.le.s32.totalorder 1, %s21
      %p243 = scmp.lt.s32.totalorder %s21, 3
      %p244 = pnand %p242, %p243
      %p245 = pneg %p244
      // Predicated region
      $region37: #{tpu_custom_call.1} parent=5 // pred_check
        _
      $region38: #{tpu_custom_call.1} parent=5 // pred_check_branch
        %247 = sbr.rel (%p244) target = $region40
      $region39: #{tpu_custom_call.1} parent=5 // pred_region
        %s248 = ssub.s32 %s21, 1
        %s249 = sand.u32 %s34, 1
        %s250 = scalar_lea.sflag [#allocation4], %s249
        %s251 = sand.u32 %s34, 1
        %s252 = smul.addr %s251, 64
        %s253 = scalar_lea.vmem [#allocation3], %s252
        // Predicated region
        $region41: #{tpu_custom_call.1} parent=39 // pred_check
          %p254 = pneg %p47
        $region42: #{tpu_custom_call.1} parent=39 // pred_check_branch
          %256 = sbr.rel (%p254) target = $region44
        $region43: #{tpu_custom_call.1} parent=39 // pred_region
          %258 = dma.done %s250, 1024
        $region44: #{tpu_custom_call.1} parent=39 // pred_fallthru
          _
        %s259 = sand.u32 %s26, 1
        %s260 = scalar_lea.sflag [#allocation7], %s259
        %s261 = sand.u32 %s60, 1
        %s262 = smul.addr %s261, 8
        %s263 = scalar_lea.vmem [#allocation6], %s262
        // Predicated region
        $region45: #{tpu_custom_call.1} parent=39 // pred_check
          %p264 = pneg %p73
        $region46: #{tpu_custom_call.1} parent=39 // pred_check_branch
          %266 = sbr.rel (%p264) target = $region48
        $region47: #{tpu_custom_call.1} parent=39 // pred_region
          %268 = dma.done %s260, 128
        $region48: #{tpu_custom_call.1} parent=39 // pred_fallthru
          _
        // Predicated region
        $region49: #{tpu_custom_call.1} parent=39 // pred_check
          %p269 = pneg %p94
        $region50: #{tpu_custom_call.1} parent=39 // pred_check_branch
          %271 = sbr.rel (%p269) target = $region52
        $region51: #{tpu_custom_call.1} parent=39 // pred_region
          %273 = dma.done [#allocation7], 2048
        $region52: #{tpu_custom_call.1} parent=39 // pred_fallthru
          _
        %s274 = sand.u32 %s34, 1
        %s275 = scalar_lea.sflag [#allocation4], %s274
        %s276 = sand.u32 %s34, 1
        %s277 = smul.addr %s276, 64
        %s278 = scalar_lea.vmem [#allocation3], %s277
        %p279 = pneg %p47
        %p280 = pneg %p44
        %s281 = sand.u32 %s26, 1
        %s282 = scalar_lea.sflag [#allocation7], %s281
        %s283 = sand.u32 %s60, 1
        %s284 = smul.addr %s283, 8
        %s285 = scalar_lea.vmem [#allocation6], %s284
        %p286 = pneg %p73
        %p287 = pneg %p70
        %p288 = pneg %p94
        %p289 = pneg %p91
        %p290 = pneg %p115
        %p291 = pneg %p112
        %p292 = pneg %p136
        %p293 = pneg %p133
        %p294 = pneg %p162
        %p295 = pneg %p159
        %s296 = sand.u32 %s149, 1
        %s297 = scalar_lea.sflag [#allocation5], %s296
        %s298 = sand.u32 %s149, 1
        %s299 = smul.addr %s298, 8
        %s300 = scalar_lea.vmem [#allocation9], %s299
        %s301 = smul.u32 8, %s26
        %v302 = vld [vmem:[%s253] sm:$0xff]
        %v303 = vld [vmem:[%s253 + $0x8] sm:$0xff]
        %v304 = vld [vmem:[%s253 + $0x10] sm:$0xff]
        %v305 = vld [vmem:[%s253 + $0x18] sm:$0xff]
        %v306 = vld [vmem:[%s253 + $0x20] sm:$0xff]
        %v307 = vld [vmem:[%s253 + $0x28] sm:$0xff]
        %v308 = vld [vmem:[%s253 + $0x30] sm:$0xff]
        %v309 = vld [vmem:[%s253 + $0x38] sm:$0xff]
        %v310 = vld [vmem:[#allocation8] sm:$0xff]
        %v311 = vld [vmem:[#allocation8 + $0x8] sm:$0xff]
        %v312 = vld [vmem:[#allocation8 + $0x10] sm:$0xff]
        %v313 = vld [vmem:[#allocation8 + $0x18] sm:$0xff]
        %v314 = vld [vmem:[#allocation8 + $0x20] sm:$0xff]
        %v315 = vld [vmem:[#allocation8 + $0x28] sm:$0xff]
        %v316 = vld [vmem:[#allocation8 + $0x30] sm:$0xff]
        %v317 = vld [vmem:[#allocation8 + $0x38] sm:$0xff]
        %v318 = vld [vmem:[#allocation8 + $0x40] sm:$0xff]
        %v319 = vld [vmem:[#allocation8 + $0x48] sm:$0xff]
        %v320 = vld [vmem:[#allocation8 + $0x50] sm:$0xff]
        %v321 = vld [vmem:[#allocation8 + $0x58] sm:$0xff]
        %v322 = vld [vmem:[#allocation8 + $0x60] sm:$0xff]
        %v323 = vld [vmem:[#allocation8 + $0x68] sm:$0xff]
        %v324 = vld [vmem:[#allocation8 + $0x70] sm:$0xff]
        %v325 = vld [vmem:[#allocation8 + $0x78] sm:$0xff]
        %v326 = vld [vmem:[%s3] sm:$0x1]
        %v328 = vperm.slane %v326, 0
        %330 = vmatpush.msra.mxu0 %v325
        %331 = vmatpush.msra.mxu0 %v324
        %332 = vmatpush.msra.mxu0 %v323
        %333 = vmatpush.msra.mxu0 %v322
        %334 = vmatpush.msra.mxu0 %v321
        %335 = vmatpush.msra.mxu0 %v320
        %336 = vmatpush.msra.mxu0 %v319
        %337 = vmatpush.msra.mxu0 %v318
        %338 = vmatpush.msra.mxu0 %v317
        %339 = vmatpush.msra.mxu0 %v316
        %340 = vmatpush.msra.mxu0 %v315
        %341 = vmatpush.msra.mxu0 %v314
        %342 = vmatpush.msra.mxu0 %v313
        %343 = vmatpush.msra.mxu0 %v312
        %344 = vmatpush.msra.mxu0 %v311
        %345 = vmatpush.msra.mxu0 %v310
        %346 = vmatmul.f32.gmra.mxu0 %v302
        %v347 = vpop.f32.mrf.mxu0
        %v348 = vadd.f32 %v328, %v347
        %349 = vmatmul.f32.gmra.mxu0 %v303
        %v350 = vpop.f32.mrf.mxu0
        %v351 = vadd.f32 %v328, %v350
        %352 = vmatmul.f32.gmra.mxu0 %v304
        %v353 = vpop.f32.mrf.mxu0
        %v354 = vadd.f32 %v328, %v353
        %355 = vmatmul.f32.gmra.mxu0 %v305
        %v356 = vpop.f32.mrf.mxu0
        %v357 = vadd.f32 %v328, %v356
        %358 = vmatmul.f32.gmra.mxu0 %v306
        %v359 = vpop.f32.mrf.mxu0
        %v360 = vadd.f32 %v328, %v359
        %361 = vmatmul.f32.gmra.mxu0 %v307
        %v362 = vpop.f32.mrf.mxu0
        %v363 = vadd.f32 %v328, %v362
        %364 = vmatmul.f32.gmra.mxu0 %v308
        %v365 = vpop.f32.mrf.mxu0
        %v366 = vadd.f32 %v328, %v365
        %367 = vmatmul.f32.gmra.mxu0 %v309
        %v368 = vpop.f32.mrf.mxu0
        %v369 = vadd.f32 %v328, %v368
        %370 = vdwg.mxu0
        %v371 = vtanh.pop %v348
        %v372 = vtanh.pop %v351
        %v373 = vtanh.pop %v354
        %v374 = vtanh.pop %v357
        %v375 = vtanh.pop %v360
        %v376 = vtanh.pop %v363
        %v377 = vtanh.pop %v366
        %v378 = vtanh.pop %v369
        %v379 = vld [vmem:[%s263] sm:$0xff]
        %v381 = vrot.slane %v379, 1
        %v382 = vrot.slane %v379, 2
        %v383 = vrot.slane %v379, 3
        %v384 = vrot.slane %v379, 4
        %v385 = vrot.slane %v379, 5
        %v386 = vrot.slane %v379, 6
        %v387 = vrot.slane %v379, 7
        %v388 = vperm.slane %v379, 0
        %v389 = vperm.slane %v381, 0
        %v390 = vperm.slane %v382, 0
        %v391 = vperm.slane %v383, 0
        %v392 = vperm.slane %v384, 0
        %v393 = vperm.slane %v385, 0
        %v394 = vperm.slane %v386, 0
        %v395 = vperm.slane %v387, 0
        %v404 = vmul.f32 %v371, %v388
        %v405 = vmul.f32 %v372, %v389
        %v406 = vmul.f32 %v373, %v390
        %v407 = vmul.f32 %v374, %v391
        %v408 = vmul.f32 %v375, %v392
        %v409 = vmul.f32 %v376, %v393
        %v410 = vmul.f32 %v377, %v394
        %v411 = vmul.f32 %v378, %v395
        %412 = vadd.xlane.f32.xlu0 %v404
        %v413 = vpop.xlane.xlu0 %412
        %414 = vadd.xlane.f32.xlu0 %v405
        %v415 = vpop.xlane.xlu0 %414
        %416 = vadd.xlane.f32.xlu0 %v406
        %v417 = vpop.xlane.xlu0 %416
        %418 = vadd.xlane.f32.xlu0 %v407
        %v419 = vpop.xlane.xlu0 %418
        %420 = vadd.xlane.f32.xlu0 %v408
        %v421 = vpop.xlane.xlu0 %420
        %422 = vadd.xlane.f32.xlu0 %v409
        %v423 = vpop.xlane.xlu0 %422
        %424 = vadd.xlane.f32.xlu0 %v410
        %v425 = vpop.xlane.xlu0 %424
        %426 = vadd.xlane.f32.xlu0 %v411
        %v427 = vpop.xlane.xlu0 %426
        %s428 = sld [smem:[#allocation2]]
        %v429 = vstv %s428
        %v430 = vadd.f32 %v413, %v429
        %v431 = vadd.f32 %v415, %v429
        %v432 = vadd.f32 %v417, %v429
        %v433 = vadd.f32 %v419, %v429
        %v434 = vadd.f32 %v421, %v429
        %v435 = vadd.f32 %v423, %v429
        %v436 = vadd.f32 %v425, %v429
        %v437 = vadd.f32 %v427, %v429
        %v446 = vlaneseq
        %v447 = vand.u32 %v446, 127
        %v448 = vperm.slane %v430, %v447
        %v449 = vperm.slane %v431, %v447
        %v450 = vperm.slane %v432, %v447
        %v451 = vperm.slane %v433, %v447
        %v452 = vperm.slane %v434, %v447
        %v453 = vperm.slane %v435, %v447
        %v454 = vperm.slane %v436, %v447
        %v455 = vperm.slane %v437, %v447
        %vm456 = vcmask 1041409
        %v457 = vsel %vm456, %v449, %v448
        %vm458 = vcmask 1042434
        %v459 = vsel %vm458, %v450, %v457
        %vm460 = vcmask 1043459
        %v461 = vsel %vm460, %v451, %v459
        %vm462 = vcmask 1044484
        %v463 = vsel %vm462, %v452, %v461
        %vm464 = vcmask 1045509
        %v465 = vsel %vm464, %v453, %v463
        %vm466 = vcmask 1046534
        %v467 = vsel %vm466, %v454, %v465
        %vm468 = vcmask 1047559
        %v469 = vsel %vm468, %v455, %v467
        %vm471 = vcmask 64512
        %v472 = vsel %vm471, %v469, -inf
        %473 = vmax.xlane.f32.xlu0 %v472
        %v474 = vpop.xlane.xlu0 %473
        %v476 = vperm.slane %v474, 0
        %v477 = vperm.slane %v474, 1
        %v478 = vperm.slane %v474, 2
        %v479 = vperm.slane %v474, 3
        %v480 = vperm.slane %v474, 4
        %v481 = vperm.slane %v474, 5
        %v482 = vperm.slane %v474, 6
        %v483 = vperm.slane %v474, 7
        %v492 = vsub.f32 %v430, %v476
        %v493 = vsub.f32 %v431, %v477
        %v494 = vsub.f32 %v432, %v478
        %v495 = vsub.f32 %v433, %v479
        %v496 = vsub.f32 %v434, %v480
        %v497 = vsub.f32 %v435, %v481
        %v498 = vsub.f32 %v436, %v482
        %v499 = vsub.f32 %v437, %v483
        %v500 = vmul.f32 %v492, 1.442695
        %v501 = vpow.pop %v500
        %v502 = vmul.f32 %v493, 1.442695
        %v503 = vpow.pop %v502
        %v504 = vmul.f32 %v494, 1.442695
        %v505 = vpow.pop %v504
        %v506 = vmul.f32 %v495, 1.442695
        %v507 = vpow.pop %v506
        %v508 = vmul.f32 %v496, 1.442695
        %v509 = vpow.pop %v508
        %v510 = vmul.f32 %v497, 1.442695
        %v511 = vpow.pop %v510
        %v512 = vmul.f32 %v498, 1.442695
        %v513 = vpow.pop %v512
        %v514 = vmul.f32 %v499, 1.442695
        %v515 = vpow.pop %v514
        %524 = vset.pattern.permute.xlu0 0
        %525 = vperm.xlu0 %524, %v501
        %v526 = vpop.permute.xlu0 %525
        %527 = vset.pattern.permute.xlu0 0
        %528 = vperm.xlu0 %527, %v503
        %v529 = vpop.permute.xlu0 %528
        %530 = vset.pattern.permute.xlu0 0
        %531 = vperm.xlu0 %530, %v505
        %v532 = vpop.permute.xlu0 %531
        %533 = vset.pattern.permute.xlu0 0
        %534 = vperm.xlu0 %533, %v507
        %v535 = vpop.permute.xlu0 %534
        %536 = vset.pattern.permute.xlu0 0
        %537 = vperm.xlu0 %536, %v509
        %v538 = vpop.permute.xlu0 %537
        %539 = vset.pattern.permute.xlu0 0
        %540 = vperm.xlu0 %539, %v511
        %v541 = vpop.permute.xlu0 %540
        %542 = vset.pattern.permute.xlu0 0
        %543 = vperm.xlu0 %542, %v513
        %v544 = vpop.permute.xlu0 %543
        %545 = vset.pattern.permute.xlu0 0
        %546 = vperm.xlu0 %545, %v515
        %v547 = vpop.permute.xlu0 %546
        %v548 = vperm.slane %v526, %v447
        %v549 = vperm.slane %v529, %v447
        %v550 = vperm.slane %v532, %v447
        %v551 = vperm.slane %v535, %v447
        %v552 = vperm.slane %v538, %v447
        %v553 = vperm.slane %v541, %v447
        %v554 = vperm.slane %v544, %v447
        %v555 = vperm.slane %v547, %v447
        %v556 = vsel %vm456, %v549, %v548
        %v557 = vsel %vm458, %v550, %v556
        %v558 = vsel %vm460, %v551, %v557
        %v559 = vsel %vm462, %v552, %v558
        %v560 = vsel %vm464, %v553, %v559
        %v561 = vsel %vm466, %v554, %v560
        %v562 = vsel %vm468, %v555, %v561
        %v564 = vsel %vm471, %v562, 0.0
        %565 = vadd.xlane.f32.xlu0 %v564
        %v566 = vpop.xlane.xlu0 %565
        %v568 = vperm.slane %v566, 0
        %v569 = vperm.slane %v566, 1
        %v570 = vperm.slane %v566, 2
        %v571 = vperm.slane %v566, 3
        %v572 = vperm.slane %v566, 4
        %v573 = vperm.slane %v566, 5
        %v574 = vperm.slane %v566, 6
        %v575 = vperm.slane %v566, 7
        %v584 = vrcp.pop %v568
        %v585 = vmul.f32 %v568, %v584
        %v586 = vsub.f32 1.0, %v585
        %v587 = vmul.f32 %v584, %v586
        %v588 = vadd.f32 %v584, %v587
        %vm589 = vweird.f32 %v568
        %vm590 = vweird.f32 %v584
        %vm591 = vmor %vm589, %vm590
        %v592 = vsel %vm591, %v584, %v588
        %v593 = vand.u32 2147483647, %v568
        %vm594 = vcmp.eq.f32.partialorder %v593, 8.507059e+37
        %v595 = vand.u32 %v568, 2147483648
        %v596 = vor.u32 1.1754944e-38, %v595
        %v597 = vsel %vm594, %v596, %v592
        %v598 = vmul.f32 %v501, %v597
        %v599 = vrcp.pop %v569
        %v600 = vmul.f32 %v569, %v599
        %v601 = vsub.f32 1.0, %v600
        %v602 = vmul.f32 %v599, %v601
        %v603 = vadd.f32 %v599, %v602
        %vm604 = vweird.f32 %v569
        %vm605 = vweird.f32 %v599
        %vm606 = vmor %vm604, %vm605
        %v607 = vsel %vm606, %v599, %v603
        %v608 = vand.u32 2147483647, %v569
        %vm609 = vcmp.eq.f32.partialorder %v608, 8.507059e+37
        %v610 = vand.u32 %v569, 2147483648
        %v611 = vor.u32 1.1754944e-38, %v610
        %v612 = vsel %vm609, %v611, %v607
        %v613 = vmul.f32 %v503, %v612
        %v614 = vrcp.pop %v570
        %v615 = vmul.f32 %v570, %v614
        %v616 = vsub.f32 1.0, %v615
        %v617 = vmul.f32 %v614, %v616
        %v618 = vadd.f32 %v614, %v617
        %vm619 = vweird.f32 %v570
        %vm620 = vweird.f32 %v614
        %vm621 = vmor %vm619, %vm620
        %v622 = vsel %vm621, %v614, %v618
        %v623 = vand.u32 2147483647, %v570
        %vm624 = vcmp.eq.f32.partialorder %v623, 8.507059e+37
        %v625 = vand.u32 %v570, 2147483648
        %v626 = vor.u32 1.1754944e-38, %v625
        %v627 = vsel %vm624, %v626, %v622
        %v628 = vmul.f32 %v505, %v627
        %v629 = vrcp.pop %v571
        %v630 = vmul.f32 %v571, %v629
        %v631 = vsub.f32 1.0, %v630
        %v632 = vmul.f32 %v629, %v631
        %v633 = vadd.f32 %v629, %v632
        %vm634 = vweird.f32 %v571
        %vm635 = vweird.f32 %v629
        %vm636 = vmor %vm634, %vm635
        %v637 = vsel %vm636, %v629, %v633
        %v638 = vand.u32 2147483647, %v571
        %vm639 = vcmp.eq.f32.partialorder %v638, 8.507059e+37
        %v640 = vand.u32 %v571, 2147483648
        %v641 = vor.u32 1.1754944e-38, %v640
        %v642 = vsel %vm639, %v641, %v637
        %v643 = vmul.f32 %v507, %v642
        %v644 = vrcp.pop %v572
        %v645 = vmul.f32 %v572, %v644
        %v646 = vsub.f32 1.0, %v645
        %v647 = vmul.f32 %v644, %v646
        %v648 = vadd.f32 %v644, %v647
        %vm649 = vweird.f32 %v572
        %vm650 = vweird.f32 %v644
        %vm651 = vmor %vm649, %vm650
        %v652 = vsel %vm651, %v644, %v648
        %v653 = vand.u32 2147483647, %v572
        %vm654 = vcmp.eq.f32.partialorder %v653, 8.507059e+37
        %v655 = vand.u32 %v572, 2147483648
        %v656 = vor.u32 1.1754944e-38, %v655
        %v657 = vsel %vm654, %v656, %v652
        %v658 = vmul.f32 %v509, %v657
        %v659 = vrcp.pop %v573
        %v660 = vmul.f32 %v573, %v659
        %v661 = vsub.f32 1.0, %v660
        %v662 = vmul.f32 %v659, %v661
        %v663 = vadd.f32 %v659, %v662
        %vm664 = vweird.f32 %v573
        %vm665 = vweird.f32 %v659
        %vm666 = vmor %vm664, %vm665
        %v667 = vsel %vm666, %v659, %v663
        %v668 = vand.u32 2147483647, %v573
        %vm669 = vcmp.eq.f32.partialorder %v668, 8.507059e+37
        %v670 = vand.u32 %v573, 2147483648
        %v671 = vor.u32 1.1754944e-38, %v670
        %v672 = vsel %vm669, %v671, %v667
        %v673 = vmul.f32 %v511, %v672
        %v674 = vrcp.pop %v574
        %v675 = vmul.f32 %v574, %v674
        %v676 = vsub.f32 1.0, %v675
        %v677 = vmul.f32 %v674, %v676
        %v678 = vadd.f32 %v674, %v677
        %vm679 = vweird.f32 %v574
        %vm680 = vweird.f32 %v674
        %vm681 = vmor %vm679, %vm680
        %v682 = vsel %vm681, %v674, %v678
        %v683 = vand.u32 2147483647, %v574
        %vm684 = vcmp.eq.f32.partialorder %v683, 8.507059e+37
        %v685 = vand.u32 %v574, 2147483648
        %v686 = vor.u32 1.1754944e-38, %v685
        %v687 = vsel %vm684, %v686, %v682
        %v688 = vmul.f32 %v513, %v687
        %v689 = vrcp.pop %v575
        %v690 = vmul.f32 %v575, %v689
        %v691 = vsub.f32 1.0, %v690
        %v692 = vmul.f32 %v689, %v691
        %v693 = vadd.f32 %v689, %v692
        %vm694 = vweird.f32 %v575
        %vm695 = vweird.f32 %v689
        %vm696 = vmor %vm694, %vm695
        %v697 = vsel %vm696, %v689, %v693
        %v698 = vand.u32 2147483647, %v575
        %vm699 = vcmp.eq.f32.partialorder %v698, 8.507059e+37
        %v700 = vand.u32 %v575, 2147483648
        %v701 = vor.u32 1.1754944e-38, %v700
        %v702 = vsel %vm699, %v701, %v697
        %v703 = vmul.f32 %v515, %v702
        %705 = vset.pattern.permute.xlu0 0
        %706 = vperm.xlu0 %705, %v598
        %v707 = vpop.permute.xlu0 %706
        %710 = vset.pattern.permute.xlu0 0
        %711 = vperm.xlu0 %710, %v613
        %v712 = vpop.permute.xlu0 %711
        %715 = vset.pattern.permute.xlu0 0
        %716 = vperm.xlu0 %715, %v628
        %v717 = vpop.permute.xlu0 %716
        %720 = vset.pattern.permute.xlu0 0
        %721 = vperm.xlu0 %720, %v643
        %v722 = vpop.permute.xlu0 %721
        %725 = vset.pattern.permute.xlu0 0
        %726 = vperm.xlu0 %725, %v658
        %v727 = vpop.permute.xlu0 %726
        %730 = vset.pattern.permute.xlu0 0
        %731 = vperm.xlu0 %730, %v673
        %v732 = vpop.permute.xlu0 %731
        %735 = vset.pattern.permute.xlu0 0
        %736 = vperm.xlu0 %735, %v688
        %v737 = vpop.permute.xlu0 %736
        %740 = vset.pattern.permute.xlu0 0
        %741 = vperm.xlu0 %740, %v703
        %v742 = vpop.permute.xlu0 %741
        %v744 = vmul.f32 %v707, %v302
        %v745 = vmul.f32 %v712, %v303
        %v746 = vmul.f32 %v717, %v304
        %v747 = vmul.f32 %v722, %v305
        %v748 = vmul.f32 %v727, %v306
        %v749 = vmul.f32 %v732, %v307
        %v750 = vmul.f32 %v737, %v308
        %v751 = vmul.f32 %v742, %v309
        %v752 = vrot.slane %v744, 4
        %v753 = vadd.f32 %v744, %v752
        %v754 = vrot.slane %v753, 2
        %v755 = vadd.f32 %v753, %v754
        %v756 = vrot.slane %v755, 1
        %v757 = vadd.f32 %v755, %v756
        %v758 = vrot.slane %v745, 4
        %v759 = vadd.f32 %v745, %v758
        %v760 = vrot.slane %v759, 2
        %v761 = vadd.f32 %v759, %v760
        %v762 = vrot.slane %v761, 1
        %v763 = vadd.f32 %v761, %v762
        %v764 = vrot.slane %v746, 4
        %v765 = vadd.f32 %v746, %v764
        %v766 = vrot.slane %v765, 2
        %v767 = vadd.f32 %v765, %v766
        %v768 = vrot.slane %v767, 1
        %v769 = vadd.f32 %v767, %v768
        %v770 = vrot.slane %v747, 4
        %v771 = vadd.f32 %v747, %v770
        %v772 = vrot.slane %v771, 2
        %v773 = vadd.f32 %v771, %v772
        %v774 = vrot.slane %v773, 1
        %v775 = vadd.f32 %v773, %v774
        %v776 = vrot.slane %v748, 4
        %v777 = vadd.f32 %v748, %v776
        %v778 = vrot.slane %v777, 2
        %v779 = vadd.f32 %v777, %v778
        %v780 = vrot.slane %v779, 1
        %v781 = vadd.f32 %v779, %v780
        %v782 = vrot.slane %v749, 4
        %v783 = vadd.f32 %v749, %v782
        %v784 = vrot.slane %v783, 2
        %v785 = vadd.f32 %v783, %v784
        %v786 = vrot.slane %v785, 1
        %v787 = vadd.f32 %v785, %v786
        %v788 = vrot.slane %v750, 4
        %v789 = vadd.f32 %v750, %v788
        %v790 = vrot.slane %v789, 2
        %v791 = vadd.f32 %v789, %v790
        %v792 = vrot.slane %v791, 1
        %v793 = vadd.f32 %v791, %v792
        %v794 = vrot.slane %v751, 4
        %v795 = vadd.f32 %v751, %v794
        %v796 = vrot.slane %v795, 2
        %v797 = vadd.f32 %v795, %v796
        %v798 = vrot.slane %v797, 1
        %v799 = vadd.f32 %v797, %v798
        %v808 = vsel %vm456, %v763, %v757
        %v809 = vsel %vm458, %v769, %v808
        %v810 = vsel %vm460, %v775, %v809
        %v811 = vsel %vm462, %v781, %v810
        %v812 = vsel %vm464, %v787, %v811
        %v813 = vsel %vm466, %v793, %v812
        %v814 = vsel %vm468, %v799, %v813
        %816 = vst [vmem:[%s300] sm:$0xff] %v814
        %s817 = sand.u32 %s149, 1
        %s818 = scalar_lea.sflag [#allocation5], %s817
        %s819 = sand.u32 %s149, 1
        %s820 = smul.addr %s819, 8
        %s821 = scalar_lea.vmem [#allocation9], %s820
        // Predicated region
        $region53: #{tpu_custom_call.1} parent=39 // pred_check
          %p822 = pneg %p159
        $region54: #{tpu_custom_call.1} parent=39 // pred_check_branch
          %824 = sbr.rel (%p822) target = $region56
        $region55: #{tpu_custom_call.1} parent=39 // pred_region
          %826 = vsyncadd %s818, 0
          %s827 = smul.addr %s26, 8
          %s828 = scalar_lea.hbm %s5, %s827
          %s830 = sshll.u32 %s821, 4
          %s831 = int_to_ptr.vmem [resolvable:$true] %s830
          %s832 = sshll.u32 %s828, 4
          %s833 = int_to_ptr.hbm [resolvable:$true] %s832
          %835 = dma.vmem_to_hbm [thread:$0]  %s831, 128, %s833, %s818
        $region56: #{tpu_custom_call.1} parent=39 // pred_fallthru
          _
      $region40: #{tpu_custom_call.1} parent=5 // pred_fallthru
        _
      %p836 = scmp.le.s32.totalorder 2, %s21
      // Predicated region
      $region57: #{tpu_custom_call.1} parent=5 // pred_check
        %p837 = pneg %p836
      $region58: #{tpu_custom_call.1} parent=5 // pred_check_branch
        %839 = sbr.rel (%p837) target = $region60
      $region59: #{tpu_custom_call.1} parent=5 // pred_region
        %s840 = ssub.s32 %s21, 2
        // Predicated region
        $region61: #{tpu_custom_call.1} parent=59 // pred_check
          %p841 = pneg %p165
        $region62: #{tpu_custom_call.1} parent=59 // pred_check_branch
          %843 = sbr.rel (%p841) target = $region64
        $region63: #{tpu_custom_call.1} parent=59 // pred_region
          %s844 = sand.u32 %s150, 1
          %s845 = scalar_lea.sflag [#allocation5], %s844
          %s846 = sand.u32 %s150, 1
          %s847 = smul.addr %s846, 8
          %s848 = scalar_lea.vmem [#allocation9], %s847
          %850 = dma.done %s845, 128
        $region64: #{tpu_custom_call.1} parent=59 // pred_fallthru
          _
      $region60: #{tpu_custom_call.1} parent=5 // pred_fallthru
        _
    $region6: #{tpu_custom_call.1} parent=1 // loop_footer
      %s25 = sadd.s32 1, %s21
    $region7: #{tpu_custom_call.1} parent=1 // loop_footer_branch
      %20 = sbr.rel target = $region3
    $region8: #{tpu_custom_call.1} parent=1 // loop_exit
      _
    %851 = vsyncpa [#allocation4], 1
    %s852 = scalar_lea.sflag [#allocation4], 1
    %853 = vsyncpa %s852, 1
    %854 = vsyncpa [#allocation7], 1
    %s855 = scalar_lea.sflag [#allocation7], 1
    %856 = vsyncpa %s855, 1
    %857 = vsyncpa [#allocation5], 1
    %s858 = scalar_lea.sflag [#allocation5], 1
    %859 = vsyncpa %s858, 1

</llo_original>
